<compile_context>
chip_gen: v7x
topology: tpu7x:2x2x1
jax: 0.10.0
libtpu: 0.0.40
codegen_flags: <defaults>
</compile_context>

<pallas_src>
import functools
from typing import NamedTuple, Tuple

import jax
import jax.numpy as jnp
from jax.experimental import pallas as pl
from jax.experimental.pallas import tpu as pltpu

IN_FEATURES = 1920
HIDDEN_PER_HEAD = 128


def _round_up(x, m):
    return (x + m - 1) // m * m


class PackedParams(NamedTuple):
    wh: jax.Array         # [1920, 128*P_pad]      bf16 (zero-padded heads)
    bh: jax.Array         # [1, 128*P_pad]         f32
    w_heads: jax.Array    # [P_pad, 128, OUT_PAD]  bf16 (zero-padded columns)
    b_heads: jax.Array    # [P_pad, 1, OUT_PAD]    f32
    out_dims: Tuple[int, ...]   # true per-head output widths
    heads_per_step: int         # G: heads processed per grid step


def pack_params(wh, bh, fc_weights, fc_biases, heads_per_step=2):
    """Pack per-head weights into stacked, lane/sublane-aligned bf16 arrays."""
    num_heads = len(fc_weights)
    out_dims = tuple(int(w.shape[1]) for w in fc_weights)
    G = heads_per_step
    p_pad = _round_up(max(num_heads, G), G)
    out_pad = _round_up(max(out_dims), 128)
    hid = HIDDEN_PER_HEAD

    wh_p = jnp.zeros((IN_FEATURES, hid * p_pad), jnp.bfloat16)
    wh_p = wh_p.at[:, : hid * num_heads].set(wh.astype(jnp.bfloat16))
    bh_p = jnp.zeros((1, hid * p_pad), jnp.float32)
    bh_p = bh_p.at[:, : hid * num_heads].set(
        bh.reshape(1, -1).astype(jnp.float32))

    w_heads = jnp.zeros((p_pad, hid, out_pad), jnp.bfloat16)
    b_heads = jnp.zeros((p_pad, 1, out_pad), jnp.float32)
    for i, (w, b) in enumerate(zip(fc_weights, fc_biases)):
        n = w.shape[1]
        w_heads = w_heads.at[i, :, :n].set(w.astype(jnp.bfloat16))
        b_heads = b_heads.at[i, 0, :n].set(b.reshape(-1).astype(jnp.float32))

    return PackedParams(wh_p, bh_p, w_heads, b_heads, out_dims, G)


def _metanet_kernel(heads_per_step, x_ref, wh_ref, bh_ref, w_ref, b_ref, out_ref):
    """One grid step: G hidden slices (+ReLU) and their G head matmuls.

    x_ref:   [B_pad, 1920]        bf16  (resident across grid steps)
    wh_ref:  [1920, 128*G]        bf16  (streamed per step)
    bh_ref:  [1, 128*G]           f32
    w_ref:   [G, 128, OUT_PAD]    bf16
    b_ref:   [G, 1, OUT_PAD]      f32
    out_ref: [G, B_pad, OUT_PAD]  f32
    """
    h = jnp.dot(x_ref[...], wh_ref[...], preferred_element_type=jnp.float32)
    h = jnp.maximum(h + bh_ref[...], 0.0)
    for g in range(heads_per_step):
        seg = h[:, g * HIDDEN_PER_HEAD:(g + 1) * HIDDEN_PER_HEAD]
        seg = seg.astype(w_ref.dtype)
        y = jnp.dot(seg, w_ref[g], preferred_element_type=jnp.float32)
        out_ref[g] = (y + b_ref[g]).astype(out_ref.dtype)


def metanet_forward(x, params: PackedParams):
    """Runs the fused MetaNet forward. Returns a list of [B, params_i] arrays."""
    G = params.heads_per_step
    p_pad = params.w_heads.shape[0]
    out_pad = params.w_heads.shape[2]
    hid = HIDDEN_PER_HEAD
    batch = x.shape[0]
    b_pad = _round_up(max(batch, 8), 8)

    # Pad batch to a full sublane tile and cast activations to bf16.
    x_p = jnp.zeros((b_pad, IN_FEATURES), jnp.bfloat16)
    x_p = x_p.at[:batch].set(x.astype(jnp.bfloat16))

    kernel = functools.partial(_metanet_kernel, G)

    out_slab = pl.pallas_call(
        kernel,
        out_shape=jax.ShapeDtypeStruct((p_pad, b_pad, out_pad), jnp.float32),
        grid=(p_pad // G,),
        in_specs=[
            pl.BlockSpec((b_pad, IN_FEATURES), lambda i: (0, 0)),    # x (resident)
            pl.BlockSpec((IN_FEATURES, hid * G), lambda i: (0, i)),  # Wh (streamed)
            pl.BlockSpec((1, hid * G), lambda i: (0, i)),            # bh
            pl.BlockSpec((G, hid, out_pad), lambda i: (i, 0, 0)),    # head weights
            pl.BlockSpec((G, 1, out_pad), lambda i: (i, 0, 0)),      # head biases
        ],
        out_specs=pl.BlockSpec((G, b_pad, out_pad), lambda i: (i, 0, 0)),
        compiler_params=pltpu.CompilerParams(
            dimension_semantics=("parallel",)),  # head groups are independent
    )(x_p, params.wh, params.bh, params.w_heads, params.b_heads)

    # Slice the real (unpadded) outputs back out, one array per param group.
    return [out_slab[i, :batch, :d] for i, d in enumerate(params.out_dims)]


def init_params(key, param_dict):
    """nn.Linear-style init: uniform(-1/sqrt(fan_in), 1/sqrt(fan_in)), f32."""
    num_params = len(param_dict)
    hidden_out = HIDDEN_PER_HEAD * num_params
    k_hw, k_hb, *k_fcs = jax.random.split(key, 2 + 2 * num_params)

    bound_h = 1.0 / (IN_FEATURES ** 0.5)
    wh = jax.random.uniform(k_hw, (IN_FEATURES, hidden_out), jnp.float32,
                            -bound_h, bound_h)
    bh = jax.random.uniform(k_hb, (1, hidden_out), jnp.float32,
                            -bound_h, bound_h)

    fc_weights, fc_biases = [], []
    bound_fc = 1.0 / (HIDDEN_PER_HEAD ** 0.5)
    for i, (_, out_dim) in enumerate(param_dict.items()):
        kw, kb = k_fcs[2 * i], k_fcs[2 * i + 1]
        fc_weights.append(
            jax.random.uniform(kw, (HIDDEN_PER_HEAD, out_dim), jnp.float32,
                               -bound_fc, bound_fc))
        fc_biases.append(
            jax.random.uniform(kb, (1, out_dim), jnp.float32,
                               -bound_fc, bound_fc))
    return wh, bh, fc_weights, fc_biases


def metanet_reference(x, wh, bh, fc_weights, fc_biases):
    """Pure-JAX reference matching the kernel's mixed precision:
    bf16 operands into the matmuls, f32 accumulation and biases."""
    f32 = jnp.float32
    xb = x.astype(jnp.bfloat16).astype(f32)
    whb = wh.astype(jnp.bfloat16).astype(f32)
    hidden = jax.nn.relu(xb @ whb + bh.reshape(1, -1).astype(f32))
    outs = []
    for i, (w, b) in enumerate(zip(fc_weights, fc_biases)):
        seg = hidden[:, i * HIDDEN_PER_HEAD:(i + 1) * HIDDEN_PER_HEAD]
        seg = seg.astype(jnp.bfloat16).astype(f32)
        wb = w.astype(jnp.bfloat16).astype(f32)
        outs.append(seg @ wb + b.reshape(1, -1).astype(f32))
    return outs


if __name__ == "__main__":
    # Synthetic param_dict: 3 parameter groups (e.g. filter counts of conv layers).
    param_dict = {"conv1_filter": 64, "conv2_filter": 128, "conv3_filter": 256}

    key = jax.random.PRNGKey(0)
    k_params, k_x = jax.random.split(key)

    wh, bh, fc_weights, fc_biases = init_params(k_params, param_dict)
    packed = pack_params(wh, bh, fc_weights, fc_biases, heads_per_step=2)

    batch = 4
    x = jax.random.normal(k_x, (batch, IN_FEATURES), jnp.float32)

    outs = metanet_forward(x, packed)
    outs = jax.block_until_ready(outs)

    refs = metanet_reference(x, wh, bh, fc_weights, fc_biases)
    for got, want in zip(outs, refs):
        assert got.shape == want.shape, (got.shape, want.shape)
        assert jnp.allclose(got, want, atol=2e-3, rtol=2e-3), \
            float(jnp.max(jnp.abs(got - want)))

    print("KERNEL_OK")
</pallas_src>

<mosaic_0001>
module attributes {stable_mosaic.version = 11 : i64} {
  func.func @_metanet_kernel(%arg0: i32, %arg1: memref<8x1920xbf16, #tpu.memory_space<vmem>>, %arg2: memref<1920x256xbf16, #tpu.memory_space<vmem>>, %arg3: memref<1x256xf32, #tpu.memory_space<vmem>>, %arg4: memref<2x128x256xbf16, #tpu.memory_space<vmem>>, %arg5: memref<2x1x256xf32, #tpu.memory_space<vmem>>, %arg6: memref<2x8x256xf32, #tpu.memory_space<vmem>>) attributes {dimension_semantics = [#tpu.dimension_semantics<parallel>], iteration_bounds = array<i64: 2>, scalar_prefetch = 0 : i64, scratch_operands = 0 : i64, tpu.core_type = #tpu.core_type<tc>, window_params = [{pipeline_mode = #tpu.pipeline_mode<synchronous>, transform_indices = @transform_0, window_bounds = array<i64: 8, 1920>}, {transform_indices = @transform_1, window_bounds = array<i64: 1920, 256>}, {transform_indices = @transform_2, window_bounds = array<i64: 1, 256>}, {transform_indices = @transform_3, window_bounds = array<i64: 2, 128, 256>}, {transform_indices = @transform_4, window_bounds = array<i64: 2, 1, 256>}, {transform_indices = @transform_5, window_bounds = array<i64: 2, 8, 256>}]} {
    %c0 = arith.constant 0 : index
    %c0_0 = arith.constant 0 : index
    %0 = vector.load %arg1[%c0, %c0_0] : memref<8x1920xbf16, #tpu.memory_space<vmem>>, vector<8x1920xbf16>
    %c0_1 = arith.constant 0 : index
    %c0_2 = arith.constant 0 : index
    %1 = vector.load %arg2[%c0_1, %c0_2] : memref<1920x256xbf16, #tpu.memory_space<vmem>>, vector<1920x256xbf16>
    %cst = arith.constant dense<0.000000e+00> : vector<8x256xf32>
    %2 = tpu.matmul %0, %1, %cst {dimension_numbers = #tpu.dot_dimension_numbers<[1], [0], [0], [1], [0, 0, 1, 1], [], []>} : vector<8x1920xbf16>, vector<1920x256xbf16>, vector<8x256xf32> -> vector<8x256xf32>
    %c0_3 = arith.constant 0 : index
    %c0_4 = arith.constant 0 : index
    %3 = vector.load %arg3[%c0_3, %c0_4] : memref<1x256xf32, #tpu.memory_space<vmem>>, vector<1x256xf32>
    %4 = vector.broadcast %3 : vector<1x256xf32> to vector<8x256xf32>
    %5 = arith.addf %2, %4 : vector<8x256xf32>
    %cst_5 = arith.constant 0.000000e+00 : f32
    %6 = vector.broadcast %cst_5 : f32 to vector<8x256xf32>
    %7 = arith.maximumf %5, %6 : vector<8x256xf32>
    %8 = vector.extract_strided_slice %7 {offsets = [0, 0], sizes = [8, 128], strides = [1, 1]} : vector<8x256xf32> to vector<8x128xf32>
    %9 = arith.truncf %8 : vector<8x128xf32> to vector<8x128xbf16>
    %c0_6 = arith.constant 0 : index
    %c0_7 = arith.constant 0 : index
    %c0_8 = arith.constant 0 : index
    %10 = vector.load %arg4[%c0_6, %c0_7, %c0_8] : memref<2x128x256xbf16, #tpu.memory_space<vmem>>, vector<1x128x256xbf16>
    %11 = vector.shape_cast %10 : vector<1x128x256xbf16> to vector<128x256xbf16>
    %cst_9 = arith.constant dense<0.000000e+00> : vector<8x256xf32>
    %12 = tpu.matmul %9, %11, %cst_9 {dimension_numbers = #tpu.dot_dimension_numbers<[1], [0], [0], [1], [0, 0, 1, 1], [], []>} : vector<8x128xbf16>, vector<128x256xbf16>, vector<8x256xf32> -> vector<8x256xf32>
    %c0_10 = arith.constant 0 : index
    %c0_11 = arith.constant 0 : index
    %c0_12 = arith.constant 0 : index
    %13 = vector.load %arg5[%c0_10, %c0_11, %c0_12] : memref<2x1x256xf32, #tpu.memory_space<vmem>>, vector<1x1x256xf32>
    %14 = vector.shape_cast %13 : vector<1x1x256xf32> to vector<1x256xf32>
    %15 = vector.broadcast %14 : vector<1x256xf32> to vector<8x256xf32>
    %16 = arith.addf %12, %15 : vector<8x256xf32>
    %c0_13 = arith.constant 0 : index
    %c0_14 = arith.constant 0 : index
    %c0_15 = arith.constant 0 : index
    %17 = vector.load %arg6[%c0_13, %c0_14, %c0_15] : memref<2x8x256xf32, #tpu.memory_space<vmem>>, vector<1x8x256xf32>
    %18 = vector.shape_cast %17 : vector<1x8x256xf32> to vector<8x256xf32>
    %19 = vector.shape_cast %16 : vector<8x256xf32> to vector<1x8x256xf32>
    tpu.vector_store %arg6[%c0_13, %c0_14, %c0_15], %19 {strides = array<i32>} : memref<2x8x256xf32, #tpu.memory_space<vmem>>, vector<1x8x256xf32>,
    %20 = vector.extract_strided_slice %7 {offsets = [0, 128], sizes = [8, 128], strides = [1, 1]} : vector<8x256xf32> to vector<8x128xf32>
    %21 = arith.truncf %20 : vector<8x128xf32> to vector<8x128xbf16>
    %c1 = arith.constant 1 : index
    %c0_16 = arith.constant 0 : index
    %c0_17 = arith.constant 0 : index
    %22 = vector.load %arg4[%c1, %c0_16, %c0_17] : memref<2x128x256xbf16, #tpu.memory_space<vmem>>, vector<1x128x256xbf16>
    %23 = vector.shape_cast %22 : vector<1x128x256xbf16> to vector<128x256xbf16>
    %cst_18 = arith.constant dense<0.000000e+00> : vector<8x256xf32>
    %24 = tpu.matmul %21, %23, %cst_18 {dimension_numbers = #tpu.dot_dimension_numbers<[1], [0], [0], [1], [0, 0, 1, 1], [], []>} : vector<8x128xbf16>, vector<128x256xbf16>, vector<8x256xf32> -> vector<8x256xf32>
    %c1_19 = arith.constant 1 : index
    %c0_20 = arith.constant 0 : index
    %c0_21 = arith.constant 0 : index
    %25 = vector.load %arg5[%c1_19, %c0_20, %c0_21] : memref<2x1x256xf32, #tpu.memory_space<vmem>>, vector<1x1x256xf32>
    %26 = vector.shape_cast %25 : vector<1x1x256xf32> to vector<1x256xf32>
    %27 = vector.broadcast %26 : vector<1x256xf32> to vector<8x256xf32>
    %28 = arith.addf %24, %27 : vector<8x256xf32>
    %c1_22 = arith.constant 1 : index
    %c0_23 = arith.constant 0 : index
    %c0_24 = arith.constant 0 : index
    %29 = vector.load %arg6[%c1_22, %c0_23, %c0_24] : memref<2x8x256xf32, #tpu.memory_space<vmem>>, vector<1x8x256xf32>
    %30 = vector.shape_cast %29 : vector<1x8x256xf32> to vector<8x256xf32>
    %31 = vector.shape_cast %28 : vector<8x256xf32> to vector<1x8x256xf32>
    tpu.vector_store %arg6[%c1_22, %c0_23, %c0_24], %31 {strides = array<i32>} : memref<2x8x256xf32, #tpu.memory_space<vmem>>, vector<1x8x256xf32>,
    return
  }
  func.func @transform_0(%arg0: i32) -> (i32, i32) {
    %c0_i32 = arith.constant 0 : i32
    %c0_i32_0 = arith.constant 0 : i32
    %c0_i32_1 = arith.constant 0 : i32
    return %c0_i32, %c0_i32_0 : i32, i32
  }
  func.func @transform_1(%arg0: i32) -> (i32, i32) {
    %c0_i32 = arith.constant 0 : i32
    %c0_i32_0 = arith.constant 0 : i32
    return %c0_i32, %arg0 : i32, i32
  }
  func.func @transform_2(%arg0: i32) -> (i32, i32) {
    %c0_i32 = arith.constant 0 : i32
    %c0_i32_0 = arith.constant 0 : i32
    return %c0_i32, %arg0 : i32, i32
  }
  func.func @transform_3(%arg0: i32) -> (i32, i32, i32) {
    %c0_i32 = arith.constant 0 : i32
    %c0_i32_0 = arith.constant 0 : i32
    %c0_i32_1 = arith.constant 0 : i32
    return %arg0, %c0_i32, %c0_i32_0 : i32, i32, i32
  }
  func.func @transform_4(%arg0: i32) -> (i32, i32, i32) {
    %c0_i32 = arith.constant 0 : i32
    %c0_i32_0 = arith.constant 0 : i32
    %c0_i32_1 = arith.constant 0 : i32
    return %arg0, %c0_i32, %c0_i32_0 : i32, i32, i32
  }
  func.func @transform_5(%arg0: i32) -> (i32, i32, i32) {
    %c0_i32 = arith.constant 0 : i32
    %c0_i32_0 = arith.constant 0 : i32
    %c0_i32_1 = arith.constant 0 : i32
    return %arg0, %c0_i32, %c0_i32_0 : i32, i32, i32
  }
}

</mosaic_0001>

<llo_original>
// kernel: tpu_custom_call.1
$region0: #{tpu_custom_call.1}
  #allocation0 [shape = 'u32[]', space=smem, size = 0x4, offset = 0x4, fixed_abs, tag = 'smem constant byte address 0x4 - core index']
  #allocation1 [shape = 'u32[144,128]{1,0:T(1,128)}', space=vmem, size = 0x12000, scoped, tag = 'internal scratch']
  %s0 = inlined_call_operand.hbm [shape: bf16[8,1920], index: 0, kind: input, shape index: {}]
  %s1 = inlined_call_operand.hbm [shape: bf16[1920,512], index: 1, kind: input, shape index: {}]
  %s2 = inlined_call_operand.hbm [shape: f32[1,512], index: 2, kind: input, shape index: {}]
  %s3 = inlined_call_operand.hbm [shape: bf16[4,128,256], index: 3, kind: input, shape index: {}]
  %s4 = inlined_call_operand.hbm [shape: f32[4,1,256], index: 4, kind: input, shape index: {}]
  %s5 = inlined_call_operand.hbm [shape: f32[4,8,256], index: 5, kind: output, shape index: {}]
  %s6 = sld [smem:[#allocation0]]
  $region73: #{tpu_custom_call.1} parent=0
    _
  %s8 = ssub.s32 1, %s6
  %s9 = scalar_select 0, %s8, %s6
  $region1: #{tpu_custom_call.1} parent=0
    #allocation2 [shape = 'u8[30720]{0}', space=vmem, size = 0x7800, scoped, tag = 'input window, operand 0, single buffered']
    #allocation3 [shape = 's32[2]{0}', space=sflag, size = 0x8, scoped, tag = 'scoped memory for tpu_custom_call.1']
    #allocation4 [shape = 's32[2]{0}', space=sflag, size = 0x8, scoped, tag = 'scoped memory for tpu_custom_call.1']
    #allocation5 [shape = 'u8[1966080]{0}', space=vmem, size = 0x1e0000, scoped, tag = 'input window, operand 1']
    #allocation6 [shape = 's32[2]{0}', space=sflag, size = 0x8, scoped, tag = 'scoped memory for tpu_custom_call.1']
    #allocation7 [shape = 'u8[2048]{0}', space=vmem, size = 0x800, scoped, tag = 'input window, operand 2']
    #allocation8 [shape = 'u8[262144]{0}', space=vmem, size = 0x40000, scoped, tag = 'input window, operand 3']
    #allocation9 [shape = 's32[2]{0}', space=sflag, size = 0x8, scoped, tag = 'scoped memory for tpu_custom_call.1']
    #allocation10 [shape = 'u8[4096]{0}', space=vmem, size = 0x1000, scoped, tag = 'input window, operand 4']
    #allocation11 [shape = 'u8[32768]{0}', space=vmem, size = 0x8000, scoped, tag = 'output window, operand 0']
    %10 = vsyncpa [#allocation3], 0
    %11 = vsyncpa [#allocation6], 0
    %s12 = scalar_lea.sflag [#allocation6], 1
    %13 = vsyncpa %s12, 0
    %14 = vsyncpa [#allocation9], 0
    %s15 = scalar_lea.sflag [#allocation9], 1
    %16 = vsyncpa %s15, 0
    %17 = vsyncpa [#allocation4], 0
    %s18 = scalar_lea.sflag [#allocation4], 1
    %19 = vsyncpa %s18, 0
    loop: start=0, step=1, limit=4
    $region2: #{tpu_custom_call.1} parent=1 // loop_pre_header
      _
    $region3: #{tpu_custom_call.1} parent=1 // loop_header
      %s21 = sphi 0, %s25
      %p22 = scmp.ge.s32.totalorder %s21, 4
      %s29 = sphi 0, %s29
      %s31 = sphi 0, %s29
      %s32 = sphi 0, %s31
      %s46 = sphi 0, %s32
      %s52 = sphi 0, %s54
      %s55 = sphi 0, %s52
      %s56 = sphi 0, %s55
      %s72 = sphi 0, %s56
      %s78 = sphi 0, %s80
      %s81 = sphi 0, %s78
      %s82 = sphi 0, %s81
      %s98 = sphi 0, %s82
      %s104 = sphi 0, %s106
      %s107 = sphi 0, %s104
      %s108 = sphi 0, %s107
      %s124 = sphi 0, %s108
      %s130 = sphi 0, %s132
      %s133 = sphi 0, %s130
      %s134 = sphi 0, %s133
      %s150 = sphi 0, %s134
      %s156 = sphi 0, %s158
      %s159 = sphi 0, %s156
      %s160 = sphi 0, %s159
      %s176 = sphi 0, %s160
    $region4: #{tpu_custom_call.1} parent=1 // loop_header_branch
      %24 = sbr.rel (%p22) target = $region8
    $region5: #{tpu_custom_call.1} parent=1 // loop_body
      %s26 = ssub.s32 %s21, 1
      %s27 = ssub.s32 %s21, 2
      %s28 = sadd.s32 %s21, 1
      %s30 = sadd.s32 %s29, 1
      %p33 = scmp.eq.s32.totalorder %s21, 1
      %p34 = scmp.ne.s32.totalorder %s29, %s31
      %p35 = scmp.eq.s32.totalorder %s21, 0
      %p36 = por %p34, %p35
      %p37 = scmp.ne.s32.totalorder %s29, %s31
      %p38 = scmp.eq.s32.totalorder %s26, 1
      %p39 = por %p37, %p38
      %p40 = scmp.ne.s32.totalorder %s31, %s32
      %p41 = scmp.eq.s32.totalorder %s26, 0
      %p42 = por %p40, %p41
      %p43 = scmp.ne.s32.totalorder %s31, %s32
      %p44 = scmp.eq.s32.totalorder %s27, 1
      %p45 = por %p43, %p44
      %p47 = scmp.ne.s32.totalorder %s32, %s46
      %p48 = scmp.eq.s32.totalorder %s27, 0
      %p49 = por %p47, %p48
      %s50 = ssub.s32 %s21, %s28
      %p51 = scmp.eq.s32.totalorder %s50, 0
      %s53 = sadd.s32 %s52, 1
      %s54 = scalar_select %p51, %s52, %s53
      %p57 = pneg %p51
      %p58 = scmp.eq.s32.totalorder %s21, 1
      %p59 = por %p57, %p58
      %p60 = scmp.ne.s32.totalorder %s52, %s55
      %p61 = scmp.eq.s32.totalorder %s21, 0
      %p62 = por %p60, %p61
      %p63 = scmp.ne.s32.totalorder %s52, %s55
      %p64 = scmp.eq.s32.totalorder %s26, 1
      %p65 = por %p63, %p64
      %p66 = scmp.ne.s32.totalorder %s55, %s56
      %p67 = scmp.eq.s32.totalorder %s26, 0
      %p68 = por %p66, %p67
      %p69 = scmp.ne.s32.totalorder %s55, %s56
      %p70 = scmp.eq.s32.totalorder %s27, 1
      %p71 = por %p69, %p70
      %p73 = scmp.ne.s32.totalorder %s56, %s72
      %p74 = scmp.eq.s32.totalorder %s27, 0
      %p75 = por %p73, %p74
      %s76 = ssub.s32 %s21, %s28
      %p77 = scmp.eq.s32.totalorder %s76, 0
      %s79 = sadd.s32 %s78, 1
      %s80 = scalar_select %p77, %s78, %s79
      %p83 = pneg %p77
      %p84 = scmp.eq.s32.totalorder %s21, 1
      %p85 = por %p83, %p84
      %p86 = scmp.ne.s32.totalorder %s78, %s81
      %p87 = scmp.eq.s32.totalorder %s21, 0
      %p88 = por %p86, %p87
      %p89 = scmp.ne.s32.totalorder %s78, %s81
      %p90 = scmp.eq.s32.totalorder %s26, 1
      %p91 = por %p89, %p90
      %p92 = scmp.ne.s32.totalorder %s81, %s82
      %p93 = scmp.eq.s32.totalorder %s26, 0
      %p94 = por %p92, %p93
      %p95 = scmp.ne.s32.totalorder %s81, %s82
      %p96 = scmp.eq.s32.totalorder %s27, 1
      %p97 = por %p95, %p96
      %p99 = scmp.ne.s32.totalorder %s82, %s98
      %p100 = scmp.eq.s32.totalorder %s27, 0
      %p101 = por %p99, %p100
      %s102 = ssub.s32 %s21, %s28
      %p103 = scmp.eq.s32.totalorder %s102, 0
      %s105 = sadd.s32 %s104, 1
      %s106 = scalar_select %p103, %s104, %s105
      %p109 = pneg %p103
      %p110 = scmp.eq.s32.totalorder %s21, 1
      %p111 = por %p109, %p110
      %p112 = scmp.ne.s32.totalorder %s104, %s107
      %p113 = scmp.eq.s32.totalorder %s21, 0
      %p114 = por %p112, %p113
      %p115 = scmp.ne.s32.totalorder %s104, %s107
      %p116 = scmp.eq.s32.totalorder %s26, 1
      %p117 = por %p115, %p116
      %p118 = scmp.ne.s32.totalorder %s107, %s108
      %p119 = scmp.eq.s32.totalorder %s26, 0
      %p120 = por %p118, %p119
      %p121 = scmp.ne.s32.totalorder %s107, %s108
      %p122 = scmp.eq.s32.totalorder %s27, 1
      %p123 = por %p121, %p122
      %p125 = scmp.ne.s32.totalorder %s108, %s124
      %p126 = scmp.eq.s32.totalorder %s27, 0
      %p127 = por %p125, %p126
      %s128 = ssub.s32 %s21, %s28
      %p129 = scmp.eq.s32.totalorder %s128, 0
      %s131 = sadd.s32 %s130, 1
      %s132 = scalar_select %p129, %s130, %s131
      %p135 = pneg %p129
      %p136 = scmp.eq.s32.totalorder %s21, 1
      %p137 = por %p135, %p136
      %p138 = scmp.ne.s32.totalorder %s130, %s133
      %p139 = scmp.eq.s32.totalorder %s21, 0
      %p140 = por %p138, %p139
      %p141 = scmp.ne.s32.totalorder %s130, %s133
      %p142 = scmp.eq.s32.totalorder %s26, 1
      %p143 = por %p141, %p142
      %p144 = scmp.ne.s32.totalorder %s133, %s134
      %p145 = scmp.eq.s32.totalorder %s26, 0
      %p146 = por %p144, %p145
      %p147 = scmp.ne.s32.totalorder %s133, %s134
      %p148 = scmp.eq.s32.totalorder %s27, 1
      %p149 = por %p147, %p148
      %p151 = scmp.ne.s32.totalorder %s134, %s150
      %p152 = scmp.eq.s32.totalorder %s27, 0
      %p153 = por %p151, %p152
      %s154 = ssub.s32 %s21, %s28
      %p155 = scmp.eq.s32.totalorder %s154, 0
      %s157 = sadd.s32 %s156, 1
      %s158 = scalar_select %p155, %s156, %s157
      %p161 = pneg %p155
      %p162 = scmp.eq.s32.totalorder %s21, 1
      %p163 = por %p161, %p162
      %p164 = scmp.ne.s32.totalorder %s156, %s159
      %p165 = scmp.eq.s32.totalorder %s21, 0
      %p166 = por %p164, %p165
      %p167 = scmp.ne.s32.totalorder %s156, %s159
      %p168 = scmp.eq.s32.totalorder %s26, 1
      %p169 = por %p167, %p168
      %p170 = scmp.ne.s32.totalorder %s159, %s160
      %p171 = scmp.eq.s32.totalorder %s26, 0
      %p172 = por %p170, %p171
      %p173 = scmp.ne.s32.totalorder %s159, %s160
      %p174 = scmp.eq.s32.totalorder %s27, 1
      %p175 = por %p173, %p174
      %p177 = scmp.ne.s32.totalorder %s160, %s176
      %p178 = scmp.eq.s32.totalorder %s27, 0
      %p179 = por %p177, %p178
      %p180 = scmp.le.s32.totalorder 1, %s21
      %p181 = scmp.lt.s32.totalorder %s21, 3
      %p182 = pnand %p180, %p181
      %p183 = pneg %p182
      // Predicated region
      $region9: #{tpu_custom_call.1} parent=5 // pred_check
        _
      $region10: #{tpu_custom_call.1} parent=5 // pred_check_branch
        %185 = sbr.rel (%p182) target = $region12
      $region11: #{tpu_custom_call.1} parent=5 // pred_region
        %s186 = ssub.s32 %s21, 1
        // Predicated region
        $region13: #{tpu_custom_call.1} parent=11 // pred_check
          %p187 = pneg %p42
        $region14: #{tpu_custom_call.1} parent=11 // pred_check_branch
          %189 = sbr.rel (%p187) target = $region16
        $region15: #{tpu_custom_call.1} parent=11 // pred_region
          %s191 = ssub.s32 960, 960
          %192 = vsyncadd [#allocation3], %s191
          %s194 = sshll.u32 [#allocation2], 4
          %s195 = int_to_ptr.vmem [resolvable:$true] %s194
          %197 = dma.hbm_to_vmem [thread:$0]  %s0, 960, %s195, [#allocation3]
        $region16: #{tpu_custom_call.1} parent=11 // pred_fallthru
          _
      $region12: #{tpu_custom_call.1} parent=5 // pred_fallthru
        _
      %p198 = scmp.lt.s32.totalorder %s21, 2
      // Predicated region
      $region17: #{tpu_custom_call.1} parent=5 // pred_check
        %p199 = pneg %p198
      $region18: #{tpu_custom_call.1} parent=5 // pred_check_branch
        %201 = sbr.rel (%p199) target = $region20
      $region19: #{tpu_custom_call.1} parent=5 // pred_region
        // Predicated region
        $region21: #{tpu_custom_call.1} parent=19 // pred_check
          %p202 = pneg %p62
        $region22: #{tpu_custom_call.1} parent=19 // pred_check_branch
          %204 = sbr.rel (%p202) target = $region24
        $region23: #{tpu_custom_call.1} parent=19 // pred_region
          %s205 = sand.u32 %s21, 1
          %s206 = scalar_lea.sflag [#allocation6], %s205
          %s207 = sand.u32 %s52, 1
          %s208 = smul.addr %s207, 1920
          %s209 = scalar_lea.vmem [#allocation5], %s208
          %s210 = smul.u32 2, %s21
          %s212 = ssub.s32 30720, 30720
          %213 = vsyncadd %s206, %s212
          %s214 = smul.addr %s210, 64
          %s215 = scalar_lea.hbm %s1, %s214
          %s216 = sshll.u32 %s209, 4
          %s217 = int_to_ptr.vmem [resolvable:$true] %s216
          %222 = dma.hbm_to_vmem [thread:$0]  %s215, 30720, %s217, %s206, 256, 128, 8
        $region24: #{tpu_custom_call.1} parent=19 // pred_fallthru
          _
        // Predicated region
        $region25: #{tpu_custom_call.1} parent=19 // pred_check
          %p223 = pneg %p88
        $region26: #{tpu_custom_call.1} parent=19 // pred_check_branch
          %225 = sbr.rel (%p223) target = $region28
        $region27: #{tpu_custom_call.1} parent=19 // pred_region
          %s226 = sand.u32 %s21, 1
          %s227 = scalar_lea.sflag [#allocation6], %s226
          %s228 = sand.u32 %s78, 1
          %s229 = smul.addr %s228, 2
          %s230 = scalar_lea.vmem [#allocation7], %s229
          %s231 = smul.u32 2, %s21
          %s233 = ssub.s32 32, 32
          %234 = vsyncadd %s227, %s233
          %s235 = smul.addr %s231, 16
          %s236 = scalar_lea.hbm %s2, %s235
          %s238 = sshll.u32 %s230, 4
          %s239 = int_to_ptr.vmem [resolvable:$true] %s238
          %241 = dma.hbm_to_vmem [thread:$0]  %s236, 32, %s239, %s227
        $region28: #{tpu_custom_call.1} parent=19 // pred_fallthru
          _
        // Predicated region
        $region29: #{tpu_custom_call.1} parent=19 // pred_check
          %p242 = pneg %p114
        $region30: #{tpu_custom_call.1} parent=19 // pred_check_branch
          %244 = sbr.rel (%p242) target = $region32
        $region31: #{tpu_custom_call.1} parent=19 // pred_region
          %s245 = sand.u32 %s21, 1
          %s246 = scalar_lea.sflag [#allocation9], %s245
          %s247 = sand.u32 %s104, 1
          %s248 = smul.addr %s247, 256
          %s249 = scalar_lea.vmem [#allocation8], %s248
          %s250 = smul.u32 2, %s21
          %s252 = ssub.s32 4096, 4096
          %253 = vsyncadd %s246, %s252
          %s254 = smul.addr %s250, 32
          %s255 = smul.addr %s254, 64
          %s256 = scalar_lea.hbm %s3, %s255
          %s257 = sshll.u32 %s249, 4
          %s258 = int_to_ptr.vmem [resolvable:$true] %s257
          %263 = dma.hbm_to_vmem [thread:$0]  %s256, 4096, %s258, %s246, 128, 128, 8
        $region32: #{tpu_custom_call.1} parent=19 // pred_fallthru
          _
        // Predicated region
        $region33: #{tpu_custom_call.1} parent=19 // pred_check
          %p264 = pneg %p140
        $region34: #{tpu_custom_call.1} parent=19 // pred_check_branch
          %266 = sbr.rel (%p264) target = $region36
        $region35: #{tpu_custom_call.1} parent=19 // pred_region
          %s267 = sand.u32 %s21, 1
          %s268 = scalar_lea.sflag [#allocation9], %s267
          %s269 = sand.u32 %s130, 1
          %s270 = smul.addr %s269, 4
          %s271 = scalar_lea.vmem [#allocation10], %s270
          %s272 = smul.u32 2, %s21
          %s274 = ssub.s32 64, 64
          %275 = vsyncadd %s268, %s274
          %s276 = smul.addr %s272, 2
          %s277 = smul.addr %s276, 16
          %s278 = scalar_lea.hbm %s4, %s277
          %s279 = sshll.u32 %s271, 4
          %s280 = int_to_ptr.vmem [resolvable:$true] %s279
          %285 = dma.hbm_to_vmem [thread:$0]  %s278, 64, %s280, %s268, 32, 32, 2
        $region36: #{tpu_custom_call.1} parent=19 // pred_fallthru
          _
      $region20: #{tpu_custom_call.1} parent=5 // pred_fallthru
        _
      %p286 = scmp.le.s32.totalorder 1, %s21
      %p287 = scmp.lt.s32.totalorder %s21, 3
      %p288 = pnand %p286, %p287
      %p289 = pneg %p288
      // Predicated region
      $region37: #{tpu_custom_call.1} parent=5 // pred_check
        _
      $region38: #{tpu_custom_call.1} parent=5 // pred_check_branch
        %291 = sbr.rel (%p288) target = $region40
      $region39: #{tpu_custom_call.1} parent=5 // pred_region
        %s292 = ssub.s32 %s21, 1
        // Predicated region
        $region41: #{tpu_custom_call.1} parent=39 // pred_check
          %p293 = pneg %p42
        $region42: #{tpu_custom_call.1} parent=39 // pred_check_branch
          %295 = sbr.rel (%p293) target = $region44
        $region43: #{tpu_custom_call.1} parent=39 // pred_region
          %296 = dma.done [#allocation3], 960
        $region44: #{tpu_custom_call.1} parent=39 // pred_fallthru
          _
        %s297 = sand.u32 %s26, 1
        %s298 = scalar_lea.sflag [#allocation6], %s297
        %s299 = sand.u32 %s55, 1
        %s300 = smul.addr %s299, 1920
        %s301 = scalar_lea.vmem [#allocation5], %s300
        // Predicated region
        $region45: #{tpu_custom_call.1} parent=39 // pred_check
          %p302 = pneg %p68
        $region46: #{tpu_custom_call.1} parent=39 // pred_check_branch
          %304 = sbr.rel (%p302) target = $region48
        $region47: #{tpu_custom_call.1} parent=39 // pred_region
          %305 = dma.done %s298, 30720
        $region48: #{tpu_custom_call.1} parent=39 // pred_fallthru
          _
        %s306 = sand.u32 %s26, 1
        %s307 = scalar_lea.sflag [#allocation6], %s306
        %s308 = sand.u32 %s81, 1
        %s309 = smul.addr %s308, 2
        %s310 = scalar_lea.vmem [#allocation7], %s309
        // Predicated region
        $region49: #{tpu_custom_call.1} parent=39 // pred_check
          %p311 = pneg %p94
        $region50: #{tpu_custom_call.1} parent=39 // pred_check_branch
          %313 = sbr.rel (%p311) target = $region52
        $region51: #{tpu_custom_call.1} parent=39 // pred_region
          %314 = dma.done %s307, 32
        $region52: #{tpu_custom_call.1} parent=39 // pred_fallthru
          _
        %s315 = sand.u32 %s26, 1
        %s316 = scalar_lea.sflag [#allocation9], %s315
        %s317 = sand.u32 %s107, 1
        %s318 = smul.addr %s317, 256
        %s319 = scalar_lea.vmem [#allocation8], %s318
        // Predicated region
        $region53: #{tpu_custom_call.1} parent=39 // pred_check
          %p320 = pneg %p120
        $region54: #{tpu_custom_call.1} parent=39 // pred_check_branch
          %322 = sbr.rel (%p320) target = $region56
        $region55: #{tpu_custom_call.1} parent=39 // pred_region
          %323 = dma.done %s316, 4096
        $region56: #{tpu_custom_call.1} parent=39 // pred_fallthru
          _
        %s324 = sand.u32 %s26, 1
        %s325 = scalar_lea.sflag [#allocation9], %s324
        %s326 = sand.u32 %s133, 1
        %s327 = smul.addr %s326, 4
        %s328 = scalar_lea.vmem [#allocation10], %s327
        // Predicated region
        $region57: #{tpu_custom_call.1} parent=39 // pred_check
          %p329 = pneg %p146
        $region58: #{tpu_custom_call.1} parent=39 // pred_check_branch
          %331 = sbr.rel (%p329) target = $region60
        $region59: #{tpu_custom_call.1} parent=39 // pred_region
          %332 = dma.done %s325, 64
        $region60: #{tpu_custom_call.1} parent=39 // pred_fallthru
          _
        %p333 = pneg %p42
        %p334 = pneg %p39
        %s335 = sand.u32 %s26, 1
        %s336 = scalar_lea.sflag [#allocation6], %s335
        %s337 = sand.u32 %s55, 1
        %s338 = smul.addr %s337, 1920
        %s339 = scalar_lea.vmem [#allocation5], %s338
        %p340 = pneg %p68
        %p341 = pneg %p65
        %s342 = sand.u32 %s26, 1
        %s343 = scalar_lea.sflag [#allocation6], %s342
        %s344 = sand.u32 %s81, 1
        %s345 = smul.addr %s344, 2
        %s346 = scalar_lea.vmem [#allocation7], %s345
        %p347 = pneg %p94
        %p348 = pneg %p91
        %s349 = sand.u32 %s26, 1
        %s350 = scalar_lea.sflag [#allocation9], %s349
        %s351 = sand.u32 %s107, 1
        %s352 = smul.addr %s351, 256
        %s353 = scalar_lea.vmem [#allocation8], %s352
        %p354 = pneg %p120
        %p355 = pneg %p117
        %s356 = sand.u32 %s26, 1
        %s357 = scalar_lea.sflag [#allocation9], %s356
        %s358 = sand.u32 %s133, 1
        %s359 = smul.addr %s358, 4
        %s360 = scalar_lea.vmem [#allocation10], %s359
        %p361 = pneg %p146
        %p362 = pneg %p143
        %p363 = pneg %p172
        %p364 = pneg %p169
        %s365 = sand.u32 %s159, 1
        %s366 = scalar_lea.sflag [#allocation4], %s365
        %s367 = sand.u32 %s159, 1
        %s368 = smul.addr %s367, 32
        %s369 = scalar_lea.vmem [#allocation11], %s368
        %s370 = smul.u32 2, %s26
        %s371 = smul.u32 2, %s26
        %s372 = smul.u32 2, %s26
        %s373 = smul.u32 2, %s26
        %s374 = smul.u32 2, %s26
        %v376 = vld [vmem:[#allocation2] sm:$0xff]
        %v377 = vld [vmem:[#allocation2 + $0x8] sm:$0xff]
        %v378 = vld [vmem:[#allocation2 + $0x10] sm:$0xff]
        %v379 = vld [vmem:[#allocation2 + $0x18] sm:$0xff]
        %v380 = vld [vmem:[#allocation2 + $0x20] sm:$0xff]
        %v381 = vld [vmem:[#allocation2 + $0x28] sm:$0xff]
        %v382 = vld [vmem:[#allocation2 + $0x30] sm:$0xff]
        %v383 = vld [vmem:[#allocation2 + $0x38] sm:$0xf]
        %v384 = vld [vmem:[%s301] sm:$0xff]
        %v385 = vld [vmem:[%s301 + $0x8] sm:$0xff]
        %v386 = vld [vmem:[%s301 + $0x10] sm:$0xff]
        %v387 = vld [vmem:[%s301 + $0x18] sm:$0xff]
        %v388 = vld [vmem:[%s301 + $0x20] sm:$0xff]
        %v389 = vld [vmem:[%s301 + $0x28] sm:$0xff]
        %v390 = vld [vmem:[%s301 + $0x30] sm:$0xff]
        %v391 = vld [vmem:[%s301 + $0x38] sm:$0xff]
        %v392 = vld [vmem:[%s301 + $0x40] sm:$0xff]
        %v393 = vld [vmem:[%s301 + $0x48] sm:$0xff]
        %v394 = vld [vmem:[%s301 + $0x50] sm:$0xff]
        %v395 = vld [vmem:[%s301 + $0x58] sm:$0xff]
        %v396 = vld [vmem:[%s301 + $0x60] sm:$0xff]
        %v397 = vld [vmem:[%s301 + $0x68] sm:$0xff]
        %v398 = vld [vmem:[%s301 + $0x70] sm:$0xff]
        %v399 = vld [vmem:[%s301 + $0x78] sm:$0xff]
        %v400 = vld [vmem:[%s301 + $0x80] sm:$0xff]
        %v401 = vld [vmem:[%s301 + $0x88] sm:$0xff]
        %v402 = vld [vmem:[%s301 + $0x90] sm:$0xff]
        %v403 = vld [vmem:[%s301 + $0x98] sm:$0xff]
        %v404 = vld [vmem:[%s301 + $0xa0] sm:$0xff]
        %v405 = vld [vmem:[%s301 + $0xa8] sm:$0xff]
        %v406 = vld [vmem:[%s301 + $0xb0] sm:$0xff]
        %v407 = vld [vmem:[%s301 + $0xb8] sm:$0xff]
        %v408 = vld [vmem:[%s301 + $0xc0] sm:$0xff]
        %v409 = vld [vmem:[%s301 + $0xc8] sm:$0xff]
        %v410 = vld [vmem:[%s301 + $0xd0] sm:$0xff]
        %v411 = vld [vmem:[%s301 + $0xd8] sm:$0xff]
        %v412 = vld [vmem:[%s301 + $0xe0] sm:$0xff]
        %v413 = vld [vmem:[%s301 + $0xe8] sm:$0xff]
        %v414 = vld [vmem:[%s301 + $0xf0] sm:$0xff]
        %v415 = vld [vmem:[%s301 + $0xf8] sm:$0xff]
        %v416 = vld [vmem:[%s301 + $0x100] sm:$0xff]
        %v417 = vld [vmem:[%s301 + $0x108] sm:$0xff]
        %v418 = vld [vmem:[%s301 + $0x110] sm:$0xff]
        %v419 = vld [vmem:[%s301 + $0x118] sm:$0xff]
        %v420 = vld [vmem:[%s301 + $0x120] sm:$0xff]
        %v421 = vld [vmem:[%s301 + $0x128] sm:$0xff]
        %v422 = vld [vmem:[%s301 + $0x130] sm:$0xff]
        %v423 = vld [vmem:[%s301 + $0x138] sm:$0xff]
        %v424 = vld [vmem:[%s301 + $0x140] sm:$0xff]
        %v425 = vld [vmem:[%s301 + $0x148] sm:$0xff]
        %v426 = vld [vmem:[%s301 + $0x150] sm:$0xff]
        %v427 = vld [vmem:[%s301 + $0x158] sm:$0xff]
        %v428 = vld [vmem:[%s301 + $0x160] sm:$0xff]
        %v429 = vld [vmem:[%s301 + $0x168] sm:$0xff]
        %v430 = vld [vmem:[%s301 + $0x170] sm:$0xff]
        %v431 = vld [vmem:[%s301 + $0x178] sm:$0xff]
        %v432 = vld [vmem:[%s301 + $0x180] sm:$0xff]
        %v433 = vld [vmem:[%s301 + $0x188] sm:$0xff]
        %v434 = vld [vmem:[%s301 + $0x190] sm:$0xff]
        %v435 = vld [vmem:[%s301 + $0x198] sm:$0xff]
        %v436 = vld [vmem:[%s301 + $0x1a0] sm:$0xff]
        %v437 = vld [vmem:[%s301 + $0x1a8] sm:$0xff]
        %v438 = vld [vmem:[%s301 + $0x1b0] sm:$0xff]
        %v439 = vld [vmem:[%s301 + $0x1b8] sm:$0xff]
        %v440 = vld [vmem:[%s301 + $0x1c0] sm:$0xff]
        %v441 = vld [vmem:[%s301 + $0x1c8] sm:$0xff]
        %v442 = vld [vmem:[%s301 + $0x1d0] sm:$0xff]
        %v443 = vld [vmem:[%s301 + $0x1d8] sm:$0xff]
        %v444 = vld [vmem:[%s301 + $0x1e0] sm:$0xff]
        %v445 = vld [vmem:[%s301 + $0x1e8] sm:$0xff]
        %v446 = vld [vmem:[%s301 + $0x1f0] sm:$0xff]
        %v447 = vld [vmem:[%s301 + $0x1f8] sm:$0xff]
        %v448 = vld [vmem:[%s301 + $0x200] sm:$0xff]
        %v449 = vld [vmem:[%s301 + $0x208] sm:$0xff]
        %v450 = vld [vmem:[%s301 + $0x210] sm:$0xff]
        %v451 = vld [vmem:[%s301 + $0x218] sm:$0xff]
        %v452 = vld [vmem:[%s301 + $0x220] sm:$0xff]
        %v453 = vld [vmem:[%s301 + $0x228] sm:$0xff]
        %v454 = vld [vmem:[%s301 + $0x230] sm:$0xff]
        %v455 = vld [vmem:[%s301 + $0x238] sm:$0xff]
        %v456 = vld [vmem:[%s301 + $0x240] sm:$0xff]
        %v457 = vld [vmem:[%s301 + $0x248] sm:$0xff]
        %v458 = vld [vmem:[%s301 + $0x250] sm:$0xff]
        %v459 = vld [vmem:[%s301 + $0x258] sm:$0xff]
        %v460 = vld [vmem:[%s301 + $0x260] sm:$0xff]
        %v461 = vld [vmem:[%s301 + $0x268] sm:$0xff]
        %v462 = vld [vmem:[%s301 + $0x270] sm:$0xff]
        %v463 = vld [vmem:[%s301 + $0x278] sm:$0xff]
        %v464 = vld [vmem:[%s301 + $0x280] sm:$0xff]
        %v465 = vld [vmem:[%s301 + $0x288] sm:$0xff]
        %v466 = vld [vmem:[%s301 + $0x290] sm:$0xff]
        %v467 = vld [vmem:[%s301 + $0x298] sm:$0xff]
        %v468 = vld [vmem:[%s301 + $0x2a0] sm:$0xff]
        %v469 = vld [vmem:[%s301 + $0x2a8] sm:$0xff]
        %v470 = vld [vmem:[%s301 + $0x2b0] sm:$0xff]
        %v471 = vld [vmem:[%s301 + $0x2b8] sm:$0xff]
        %v472 = vld [vmem:[%s301 + $0x2c0] sm:$0xff]
        %v473 = vld [vmem:[%s301 + $0x2c8] sm:$0xff]
        %v474 = vld [vmem:[%s301 + $0x2d0] sm:$0xff]
        %v475 = vld [vmem:[%s301 + $0x2d8] sm:$0xff]
        %v476 = vld [vmem:[%s301 + $0x2e0] sm:$0xff]
        %v477 = vld [vmem:[%s301 + $0x2e8] sm:$0xff]
        %v478 = vld [vmem:[%s301 + $0x2f0] sm:$0xff]
        %v479 = vld [vmem:[%s301 + $0x2f8] sm:$0xff]
        %v480 = vld [vmem:[%s301 + $0x300] sm:$0xff]
        %v481 = vld [vmem:[%s301 + $0x308] sm:$0xff]
        %v482 = vld [vmem:[%s301 + $0x310] sm:$0xff]
        %v483 = vld [vmem:[%s301 + $0x318] sm:$0xff]
        %v484 = vld [vmem:[%s301 + $0x320] sm:$0xff]
        %v485 = vld [vmem:[%s301 + $0x328] sm:$0xff]
        %v486 = vld [vmem:[%s301 + $0x330] sm:$0xff]
        %v487 = vld [vmem:[%s301 + $0x338] sm:$0xff]
        %v488 = vld [vmem:[%s301 + $0x340] sm:$0xff]
        %v489 = vld [vmem:[%s301 + $0x348] sm:$0xff]
        %v490 = vld [vmem:[%s301 + $0x350] sm:$0xff]
        %v491 = vld [vmem:[%s301 + $0x358] sm:$0xff]
        %v492 = vld [vmem:[%s301 + $0x360] sm:$0xff]
        %v493 = vld [vmem:[%s301 + $0x368] sm:$0xff]
        %v494 = vld [vmem:[%s301 + $0x370] sm:$0xff]
        %v495 = vld [vmem:[%s301 + $0x378] sm:$0xff]
        %v496 = vld [vmem:[%s301 + $0x380] sm:$0xff]
        %v497 = vld [vmem:[%s301 + $0x388] sm:$0xff]
        %v498 = vld [vmem:[%s301 + $0x390] sm:$0xff]
        %v499 = vld [vmem:[%s301 + $0x398] sm:$0xff]
        %v500 = vld [vmem:[%s301 + $0x3a0] sm:$0xff]
        %v501 = vld [vmem:[%s301 + $0x3a8] sm:$0xff]
        %v502 = vld [vmem:[%s301 + $0x3b0] sm:$0xff]
        %v503 = vld [vmem:[%s301 + $0x3b8] sm:$0xff]
        %v504 = vld [vmem:[%s301 + $0x3c0] sm:$0xff]
        %v505 = vld [vmem:[%s301 + $0x3c8] sm:$0xff]
        %v506 = vld [vmem:[%s301 + $0x3d0] sm:$0xff]
        %v507 = vld [vmem:[%s301 + $0x3d8] sm:$0xff]
        %v508 = vld [vmem:[%s301 + $0x3e0] sm:$0xff]
        %v509 = vld [vmem:[%s301 + $0x3e8] sm:$0xff]
        %v510 = vld [vmem:[%s301 + $0x3f0] sm:$0xff]
        %v511 = vld [vmem:[%s301 + $0x3f8] sm:$0xff]
        %v512 = vld [vmem:[%s301 + $0x400] sm:$0xff]
        %v513 = vld [vmem:[%s301 + $0x408] sm:$0xff]
        %v514 = vld [vmem:[%s301 + $0x410] sm:$0xff]
        %v515 = vld [vmem:[%s301 + $0x418] sm:$0xff]
        %v516 = vld [vmem:[%s301 + $0x420] sm:$0xff]
        %v517 = vld [vmem:[%s301 + $0x428] sm:$0xff]
        %v518 = vld [vmem:[%s301 + $0x430] sm:$0xff]
        %v519 = vld [vmem:[%s301 + $0x438] sm:$0xff]
        %v520 = vld [vmem:[%s301 + $0x440] sm:$0xff]
        %v521 = vld [vmem:[%s301 + $0x448] sm:$0xff]
        %v522 = vld [vmem:[%s301 + $0x450] sm:$0xff]
        %v523 = vld [vmem:[%s301 + $0x458] sm:$0xff]
        %v524 = vld [vmem:[%s301 + $0x460] sm:$0xff]
        %v525 = vld [vmem:[%s301 + $0x468] sm:$0xff]
        %v526 = vld [vmem:[%s301 + $0x470] sm:$0xff]
        %v527 = vld [vmem:[%s301 + $0x478] sm:$0xff]
        %v528 = vld [vmem:[%s301 + $0x480] sm:$0xff]
        %v529 = vld [vmem:[%s301 + $0x488] sm:$0xff]
        %v530 = vld [vmem:[%s301 + $0x490] sm:$0xff]
        %v531 = vld [vmem:[%s301 + $0x498] sm:$0xff]
        %v532 = vld [vmem:[%s301 + $0x4a0] sm:$0xff]
        %v533 = vld [vmem:[%s301 + $0x4a8] sm:$0xff]
        %v534 = vld [vmem:[%s301 + $0x4b0] sm:$0xff]
        %v535 = vld [vmem:[%s301 + $0x4b8] sm:$0xff]
        %v536 = vld [vmem:[%s301 + $0x4c0] sm:$0xff]
        %v537 = vld [vmem:[%s301 + $0x4c8] sm:$0xff]
        %v538 = vld [vmem:[%s301 + $0x4d0] sm:$0xff]
        %v539 = vld [vmem:[%s301 + $0x4d8] sm:$0xff]
        %v540 = vld [vmem:[%s301 + $0x4e0] sm:$0xff]
        %v541 = vld [vmem:[%s301 + $0x4e8] sm:$0xff]
        %v542 = vld [vmem:[%s301 + $0x4f0] sm:$0xff]
        %v543 = vld [vmem:[%s301 + $0x4f8] sm:$0xff]
        %v544 = vld [vmem:[%s301 + $0x500] sm:$0xff]
        %v545 = vld [vmem:[%s301 + $0x508] sm:$0xff]
        %v546 = vld [vmem:[%s301 + $0x510] sm:$0xff]
        %v547 = vld [vmem:[%s301 + $0x518] sm:$0xff]
        %v548 = vld [vmem:[%s301 + $0x520] sm:$0xff]
        %v549 = vld [vmem:[%s301 + $0x528] sm:$0xff]
        %v550 = vld [vmem:[%s301 + $0x530] sm:$0xff]
        %v551 = vld [vmem:[%s301 + $0x538] sm:$0xff]
        %v552 = vld [vmem:[%s301 + $0x540] sm:$0xff]
        %v553 = vld [vmem:[%s301 + $0x548] sm:$0xff]
        %v554 = vld [vmem:[%s301 + $0x550] sm:$0xff]
        %v555 = vld [vmem:[%s301 + $0x558] sm:$0xff]
        %v556 = vld [vmem:[%s301 + $0x560] sm:$0xff]
        %v557 = vld [vmem:[%s301 + $0x568] sm:$0xff]
        %v558 = vld [vmem:[%s301 + $0x570] sm:$0xff]
        %v559 = vld [vmem:[%s301 + $0x578] sm:$0xff]
        %v560 = vld [vmem:[%s301 + $0x580] sm:$0xff]
        %v561 = vld [vmem:[%s301 + $0x588] sm:$0xff]
        %v562 = vld [vmem:[%s301 + $0x590] sm:$0xff]
        %v563 = vld [vmem:[%s301 + $0x598] sm:$0xff]
        %v564 = vld [vmem:[%s301 + $0x5a0] sm:$0xff]
        %v565 = vld [vmem:[%s301 + $0x5a8] sm:$0xff]
        %v566 = vld [vmem:[%s301 + $0x5b0] sm:$0xff]
        %v567 = vld [vmem:[%s301 + $0x5b8] sm:$0xff]
        %v568 = vld [vmem:[%s301 + $0x5c0] sm:$0xff]
        %v569 = vld [vmem:[%s301 + $0x5c8] sm:$0xff]
        %v570 = vld [vmem:[%s301 + $0x5d0] sm:$0xff]
        %v571 = vld [vmem:[%s301 + $0x5d8] sm:$0xff]
        %v572 = vld [vmem:[%s301 + $0x5e0] sm:$0xff]
        %v573 = vld [vmem:[%s301 + $0x5e8] sm:$0xff]
        %v574 = vld [vmem:[%s301 + $0x5f0] sm:$0xff]
        %v575 = vld [vmem:[%s301 + $0x5f8] sm:$0xff]
        %v576 = vld [vmem:[%s301 + $0x600] sm:$0xff]
        %v577 = vld [vmem:[%s301 + $0x608] sm:$0xff]
        %v578 = vld [vmem:[%s301 + $0x610] sm:$0xff]
        %v579 = vld [vmem:[%s301 + $0x618] sm:$0xff]
        %v580 = vld [vmem:[%s301 + $0x620] sm:$0xff]
        %v581 = vld [vmem:[%s301 + $0x628] sm:$0xff]
        %v582 = vld [vmem:[%s301 + $0x630] sm:$0xff]
        %v583 = vld [vmem:[%s301 + $0x638] sm:$0xff]
        %v584 = vld [vmem:[%s301 + $0x640] sm:$0xff]
        %v585 = vld [vmem:[%s301 + $0x648] sm:$0xff]
        %v586 = vld [vmem:[%s301 + $0x650] sm:$0xff]
        %v587 = vld [vmem:[%s301 + $0x658] sm:$0xff]
        %v588 = vld [vmem:[%s301 + $0x660] sm:$0xff]
        %v589 = vld [vmem:[%s301 + $0x668] sm:$0xff]
        %v590 = vld [vmem:[%s301 + $0x670] sm:$0xff]
        %v591 = vld [vmem:[%s301 + $0x678] sm:$0xff]
        %v592 = vld [vmem:[%s301 + $0x680] sm:$0xff]
        %v593 = vld [vmem:[%s301 + $0x688] sm:$0xff]
        %v594 = vld [vmem:[%s301 + $0x690] sm:$0xff]
        %v595 = vld [vmem:[%s301 + $0x698] sm:$0xff]
        %v596 = vld [vmem:[%s301 + $0x6a0] sm:$0xff]
        %v597 = vld [vmem:[%s301 + $0x6a8] sm:$0xff]
        %v598 = vld [vmem:[%s301 + $0x6b0] sm:$0xff]
        %v599 = vld [vmem:[%s301 + $0x6b8] sm:$0xff]
        %v600 = vld [vmem:[%s301 + $0x6c0] sm:$0xff]
        %v601 = vld [vmem:[%s301 + $0x6c8] sm:$0xff]
        %v602 = vld [vmem:[%s301 + $0x6d0] sm:$0xff]
        %v603 = vld [vmem:[%s301 + $0x6d8] sm:$0xff]
        %v604 = vld [vmem:[%s301 + $0x6e0] sm:$0xff]
        %v605 = vld [vmem:[%s301 + $0x6e8] sm:$0xff]
        %v606 = vld [vmem:[%s301 + $0x6f0] sm:$0xff]
        %v607 = vld [vmem:[%s301 + $0x6f8] sm:$0xff]
        %v608 = vld [vmem:[%s301 + $0x700] sm:$0xff]
        %v609 = vld [vmem:[%s301 + $0x708] sm:$0xff]
        %v610 = vld [vmem:[%s301 + $0x710] sm:$0xff]
        %v611 = vld [vmem:[%s301 + $0x718] sm:$0xff]
        %v612 = vld [vmem:[%s301 + $0x720] sm:$0xff]
        %v613 = vld [vmem:[%s301 + $0x728] sm:$0xff]
        %v614 = vld [vmem:[%s301 + $0x730] sm:$0xff]
        %v615 = vld [vmem:[%s301 + $0x738] sm:$0xff]
        %v616 = vld [vmem:[%s301 + $0x740] sm:$0xff]
        %v617 = vld [vmem:[%s301 + $0x748] sm:$0xff]
        %v618 = vld [vmem:[%s301 + $0x750] sm:$0xff]
        %v619 = vld [vmem:[%s301 + $0x758] sm:$0xff]
        %v620 = vld [vmem:[%s301 + $0x760] sm:$0xff]
        %v621 = vld [vmem:[%s301 + $0x768] sm:$0xff]
        %v622 = vld [vmem:[%s301 + $0x770] sm:$0xff]
        %v623 = vld [vmem:[%s301 + $0x778] sm:$0xff]
        %v624 = vld [vmem:[%s310] sm:$0x3]
        %v626 = vlaneseq
        %v627 = vshrl.u32 %v626, 7
        %v628 = vsub.s32 0, %v627
        %v629 = vrot.slane %v624, %v628
        %v630 = vlaneseq
        %v631 = vshrl.u32 %v630, 7
        %v632 = vsub.s32 1, %v631
        %v633 = vrot.slane %v624, %v632
        %v644 = vunpack.c.l.b16 %v376
        %v645 = vunpack.c.h.b16 %v376
        %v646 = vunpack.c.l.b16 %v377
        %v647 = vunpack.c.h.b16 %v377
        %v648 = vunpack.c.l.b16 %v378
        %v649 = vunpack.c.h.b16 %v378
        %v650 = vunpack.c.l.b16 %v379
        %v651 = vunpack.c.h.b16 %v379
        %v652 = vunpack.c.l.b16 %v380
        %v653 = vunpack.c.h.b16 %v380
        %v654 = vunpack.c.l.b16 %v381
        %v655 = vunpack.c.h.b16 %v381
        %v656 = vunpack.c.l.b16 %v382
        %v657 = vunpack.c.h.b16 %v382
        %v658 = vunpack.c.l.b16 %v383
        %v659 = vpack.c.b16 %v644, %v644
        %v660 = vpack.c.b16 %v645, %v645
        %v661 = vpack.c.b16 %v646, %v646
        %v662 = vpack.c.b16 %v647, %v647
        %v663 = vpack.c.b16 %v648, %v648
        %v664 = vpack.c.b16 %v649, %v649
        %v665 = vpack.c.b16 %v650, %v650
        %v666 = vpack.c.b16 %v651, %v651
        %v667 = vpack.c.b16 %v652, %v652
        %v668 = vpack.c.b16 %v653, %v653
        %v669 = vpack.c.b16 %v654, %v654
        %v670 = vpack.c.b16 %v655, %v655
        %v671 = vpack.c.b16 %v656, %v656
        %v672 = vpack.c.b16 %v657, %v657
        %v673 = vpack.c.b16 %v658, %v658
        %v929 = vunpack.c.l.b16 %v384
        %v930 = vunpack.c.h.b16 %v384
        %v931 = vunpack.c.l.b16 %v385
        %v932 = vunpack.c.h.b16 %v385
        %v933 = vunpack.c.l.b16 %v386
        %v934 = vunpack.c.h.b16 %v386
        %v935 = vunpack.c.l.b16 %v387
        %v936 = vunpack.c.h.b16 %v387
        %v937 = vunpack.c.l.b16 %v388
        %v938 = vunpack.c.h.b16 %v388
        %v939 = vunpack.c.l.b16 %v389
        %v940 = vunpack.c.h.b16 %v389
        %v941 = vunpack.c.l.b16 %v390
        %v942 = vunpack.c.h.b16 %v390
        %v943 = vunpack.c.l.b16 %v391
        %v944 = vunpack.c.h.b16 %v391
        %v945 = vunpack.c.l.b16 %v392
        %v946 = vunpack.c.h.b16 %v392
        %v947 = vunpack.c.l.b16 %v393
        %v948 = vunpack.c.h.b16 %v393
        %v949 = vunpack.c.l.b16 %v394
        %v950 = vunpack.c.h.b16 %v394
        %v951 = vunpack.c.l.b16 %v395
        %v952 = vunpack.c.h.b16 %v395
        %v953 = vunpack.c.l.b16 %v396
        %v954 = vunpack.c.h.b16 %v396
        %v955 = vunpack.c.l.b16 %v397
        %v956 = vunpack.c.h.b16 %v397
        %v957 = vunpack.c.l.b16 %v398
        %v958 = vunpack.c.h.b16 %v398
        %v959 = vunpack.c.l.b16 %v399
        %v960 = vunpack.c.h.b16 %v399
        %v961 = vunpack.c.l.b16 %v400
        %v962 = vunpack.c.h.b16 %v400
        %v963 = vunpack.c.l.b16 %v401
        %v964 = vunpack.c.h.b16 %v401
        %v965 = vunpack.c.l.b16 %v402
        %v966 = vunpack.c.h.b16 %v402
        %v967 = vunpack.c.l.b16 %v403
        %v968 = vunpack.c.h.b16 %v403
        %v969 = vunpack.c.l.b16 %v404
        %v970 = vunpack.c.h.b16 %v404
        %v971 = vunpack.c.l.b16 %v405
        %v972 = vunpack.c.h.b16 %v405
        %v973 = vunpack.c.l.b16 %v406
        %v974 = vunpack.c.h.b16 %v406
        %v975 = vunpack.c.l.b16 %v407
        %v976 = vunpack.c.h.b16 %v407
        %v977 = vunpack.c.l.b16 %v408
        %v978 = vunpack.c.h.b16 %v408
        %v979 = vunpack.c.l.b16 %v409
        %v980 = vunpack.c.h.b16 %v409
        %v981 = vunpack.c.l.b16 %v410
        %v982 = vunpack.c.h.b16 %v410
        %v983 = vunpack.c.l.b16 %v411
        %v984 = vunpack.c.h.b16 %v411
        %v985 = vunpack.c.l.b16 %v412
        %v986 = vunpack.c.h.b16 %v412
        %v987 = vunpack.c.l.b16 %v413
        %v988 = vunpack.c.h.b16 %v413
        %v989 = vunpack.c.l.b16 %v414
        %v990 = vunpack.c.h.b16 %v414
        %v991 = vunpack.c.l.b16 %v415
        %v992 = vunpack.c.h.b16 %v415
        %v993 = vunpack.c.l.b16 %v416
        %v994 = vunpack.c.h.b16 %v416
        %v995 = vunpack.c.l.b16 %v417
        %v996 = vunpack.c.h.b16 %v417
        %v997 = vunpack.c.l.b16 %v418
        %v998 = vunpack.c.h.b16 %v418
        %v999 = vunpack.c.l.b16 %v419
        %v1000 = vunpack.c.h.b16 %v419
        %v1001 = vunpack.c.l.b16 %v420
        %v1002 = vunpack.c.h.b16 %v420
        %v1003 = vunpack.c.l.b16 %v421
        %v1004 = vunpack.c.h.b16 %v421
        %v1005 = vunpack.c.l.b16 %v422
        %v1006 = vunpack.c.h.b16 %v422
        %v1007 = vunpack.c.l.b16 %v423
        %v1008 = vunpack.c.h.b16 %v423
        %v1009 = vunpack.c.l.b16 %v424
        %v1010 = vunpack.c.h.b16 %v424
        %v1011 = vunpack.c.l.b16 %v425
        %v1012 = vunpack.c.h.b16 %v425
        %v1013 = vunpack.c.l.b16 %v426
        %v1014 = vunpack.c.h.b16 %v426
        %v1015 = vunpack.c.l.b16 %v427
        %v1016 = vunpack.c.h.b16 %v427
        %v1017 = vunpack.c.l.b16 %v428
        %v1018 = vunpack.c.h.b16 %v428
        %v1019 = vunpack.c.l.b16 %v429
        %v1020 = vunpack.c.h.b16 %v429
        %v1021 = vunpack.c.l.b16 %v430
        %v1022 = vunpack.c.h.b16 %v430
        %v1023 = vunpack.c.l.b16 %v431
        %v1024 = vunpack.c.h.b16 %v431
        %v1025 = vunpack.c.l.b16 %v432
        %v1026 = vunpack.c.h.b16 %v432
        %v1027 = vunpack.c.l.b16 %v433
        %v1028 = vunpack.c.h.b16 %v433
        %v1029 = vunpack.c.l.b16 %v434
        %v1030 = vunpack.c.h.b16 %v434
        %v1031 = vunpack.c.l.b16 %v435
        %v1032 = vunpack.c.h.b16 %v435
        %v1033 = vunpack.c.l.b16 %v436
        %v1034 = vunpack.c.h.b16 %v436
        %v1035 = vunpack.c.l.b16 %v437
        %v1036 = vunpack.c.h.b16 %v437
        %v1037 = vunpack.c.l.b16 %v438
        %v1038 = vunpack.c.h.b16 %v438
        %v1039 = vunpack.c.l.b16 %v439
        %v1040 = vunpack.c.h.b16 %v439
        %v1041 = vunpack.c.l.b16 %v440
        %v1042 = vunpack.c.h.b16 %v440
        %v1043 = vunpack.c.l.b16 %v441
        %v1044 = vunpack.c.h.b16 %v441
        %v1045 = vunpack.c.l.b16 %v442
        %v1046 = vunpack.c.h.b16 %v442
        %v1047 = vunpack.c.l.b16 %v443
        %v1048 = vunpack.c.h.b16 %v443
        %v1049 = vunpack.c.l.b16 %v444
        %v1050 = vunpack.c.h.b16 %v444
        %v1051 = vunpack.c.l.b16 %v445
        %v1052 = vunpack.c.h.b16 %v445
        %v1053 = vunpack.c.l.b16 %v446
        %v1054 = vunpack.c.h.b16 %v446
        %v1055 = vunpack.c.l.b16 %v447
        %v1056 = vunpack.c.h.b16 %v447
        %v1057 = vunpack.c.l.b16 %v448
        %v1058 = vunpack.c.h.b16 %v448
        %v1059 = vunpack.c.l.b16 %v449
        %v1060 = vunpack.c.h.b16 %v449
        %v1061 = vunpack.c.l.b16 %v450
        %v1062 = vunpack.c.h.b16 %v450
        %v1063 = vunpack.c.l.b16 %v451
        %v1064 = vunpack.c.h.b16 %v451
        %v1065 = vunpack.c.l.b16 %v452
        %v1066 = vunpack.c.h.b16 %v452
        %v1067 = vunpack.c.l.b16 %v453
        %v1068 = vunpack.c.h.b16 %v453
        %v1069 = vunpack.c.l.b16 %v454
        %v1070 = vunpack.c.h.b16 %v454
        %v1071 = vunpack.c.l.b16 %v455
        %v1072 = vunpack.c.h.b16 %v455
        %v1073 = vunpack.c.l.b16 %v456
        %v1074 = vunpack.c.h.b16 %v456
        %v1075 = vunpack.c.l.b16 %v457
        %v1076 = vunpack.c.h.b16 %v457
        %v1077 = vunpack.c.l.b16 %v458
        %v1078 = vunpack.c.h.b16 %v458
        %v1079 = vunpack.c.l.b16 %v459
        %v1080 = vunpack.c.h.b16 %v459
        %v1081 = vunpack.c.l.b16 %v460
        %v1082 = vunpack.c.h.b16 %v460
        %v1083 = vunpack.c.l.b16 %v461
        %v1084 = vunpack.c.h.b16 %v461
        %v1085 = vunpack.c.l.b16 %v462
        %v1086 = vunpack.c.h.b16 %v462
        %v1087 = vunpack.c.l.b16 %v463
        %v1088 = vunpack.c.h.b16 %v463
        %v1089 = vunpack.c.l.b16 %v464
        %v1090 = vunpack.c.h.b16 %v464
        %v1091 = vunpack.c.l.b16 %v465
        %v1092 = vunpack.c.h.b16 %v465
        %v1093 = vunpack.c.l.b16 %v466
        %v1094 = vunpack.c.h.b16 %v466
        %v1095 = vunpack.c.l.b16 %v467
        %v1096 = vunpack.c.h.b16 %v467
        %v1097 = vunpack.c.l.b16 %v468
        %v1098 = vunpack.c.h.b16 %v468
        %v1099 = vunpack.c.l.b16 %v469
        %v1100 = vunpack.c.h.b16 %v469
        %v1101 = vunpack.c.l.b16 %v470
        %v1102 = vunpack.c.h.b16 %v470
        %v1103 = vunpack.c.l.b16 %v471
        %v1104 = vunpack.c.h.b16 %v471
        %v1105 = vunpack.c.l.b16 %v472
        %v1106 = vunpack.c.h.b16 %v472
        %v1107 = vunpack.c.l.b16 %v473
        %v1108 = vunpack.c.h.b16 %v473
        %v1109 = vunpack.c.l.b16 %v474
        %v1110 = vunpack.c.h.b16 %v474
        %v1111 = vunpack.c.l.b16 %v475
        %v1112 = vunpack.c.h.b16 %v475
        %v1113 = vunpack.c.l.b16 %v476
        %v1114 = vunpack.c.h.b16 %v476
        %v1115 = vunpack.c.l.b16 %v477
        %v1116 = vunpack.c.h.b16 %v477
        %v1117 = vunpack.c.l.b16 %v478
        %v1118 = vunpack.c.h.b16 %v478
        %v1119 = vunpack.c.l.b16 %v479
        %v1120 = vunpack.c.h.b16 %v479
        %v1121 = vunpack.c.l.b16 %v480
        %v1122 = vunpack.c.h.b16 %v480
        %v1123 = vunpack.c.l.b16 %v481
        %v1124 = vunpack.c.h.b16 %v481
        %v1125 = vunpack.c.l.b16 %v482
        %v1126 = vunpack.c.h.b16 %v482
        %v1127 = vunpack.c.l.b16 %v483
        %v1128 = vunpack.c.h.b16 %v483
        %v1129 = vunpack.c.l.b16 %v484
        %v1130 = vunpack.c.h.b16 %v484
        %v1131 = vunpack.c.l.b16 %v485
        %v1132 = vunpack.c.h.b16 %v485
        %v1133 = vunpack.c.l.b16 %v486
        %v1134 = vunpack.c.h.b16 %v486
        %v1135 = vunpack.c.l.b16 %v487
        %v1136 = vunpack.c.h.b16 %v487
        %v1137 = vunpack.c.l.b16 %v488
        %v1138 = vunpack.c.h.b16 %v488
        %v1139 = vunpack.c.l.b16 %v489
        %v1140 = vunpack.c.h.b16 %v489
        %v1141 = vunpack.c.l.b16 %v490
        %v1142 = vunpack.c.h.b16 %v490
        %v1143 = vunpack.c.l.b16 %v491
        %v1144 = vunpack.c.h.b16 %v491
        %v1145 = vunpack.c.l.b16 %v492
        %v1146 = vunpack.c.h.b16 %v492
        %v1147 = vunpack.c.l.b16 %v493
        %v1148 = vunpack.c.h.b16 %v493
        %v1149 = vunpack.c.l.b16 %v494
        %v1150 = vunpack.c.h.b16 %v494
        %v1151 = vunpack.c.l.b16 %v495
        %v1152 = vunpack.c.h.b16 %v495
        %v1153 = vunpack.c.l.b16 %v496
        %v1154 = vunpack.c.h.b16 %v496
        %v1155 = vunpack.c.l.b16 %v497
        %v1156 = vunpack.c.h.b16 %v497
        %v1157 = vunpack.c.l.b16 %v498
        %v1158 = vunpack.c.h.b16 %v498
        %v1159 = vunpack.c.l.b16 %v499
        %v1160 = vunpack.c.h.b16 %v499
        %v1161 = vunpack.c.l.b16 %v500
        %v1162 = vunpack.c.h.b16 %v500
        %v1163 = vunpack.c.l.b16 %v501
        %v1164 = vunpack.c.h.b16 %v501
        %v1165 = vunpack.c.l.b16 %v502
        %v1166 = vunpack.c.h.b16 %v502
        %v1167 = vunpack.c.l.b16 %v503
        %v1168 = vunpack.c.h.b16 %v503
        %v1169 = vunpack.c.l.b16 %v504
        %v1170 = vunpack.c.h.b16 %v504
        %v1171 = vunpack.c.l.b16 %v505
        %v1172 = vunpack.c.h.b16 %v505
        %v1173 = vunpack.c.l.b16 %v506
        %v1174 = vunpack.c.h.b16 %v506
        %v1175 = vunpack.c.l.b16 %v507
        %v1176 = vunpack.c.h.b16 %v507
        %v1177 = vunpack.c.l.b16 %v508
        %v1178 = vunpack.c.h.b16 %v508
        %v1179 = vunpack.c.l.b16 %v509
        %v1180 = vunpack.c.h.b16 %v509
        %v1181 = vunpack.c.l.b16 %v510
        %v1182 = vunpack.c.h.b16 %v510
        %v1183 = vunpack.c.l.b16 %v511
        %v1184 = vunpack.c.h.b16 %v511
        %v1185 = vunpack.c.l.b16 %v512
        %v1186 = vunpack.c.h.b16 %v512
        %v1187 = vunpack.c.l.b16 %v513
        %v1188 = vunpack.c.h.b16 %v513
        %v1189 = vunpack.c.l.b16 %v514
        %v1190 = vunpack.c.h.b16 %v514
        %v1191 = vunpack.c.l.b16 %v515
        %v1192 = vunpack.c.h.b16 %v515
        %v1193 = vunpack.c.l.b16 %v516
        %v1194 = vunpack.c.h.b16 %v516
        %v1195 = vunpack.c.l.b16 %v517
        %v1196 = vunpack.c.h.b16 %v517
        %v1197 = vunpack.c.l.b16 %v518
        %v1198 = vunpack.c.h.b16 %v518
        %v1199 = vunpack.c.l.b16 %v519
        %v1200 = vunpack.c.h.b16 %v519
        %v1201 = vunpack.c.l.b16 %v520
        %v1202 = vunpack.c.h.b16 %v520
        %v1203 = vunpack.c.l.b16 %v521
        %v1204 = vunpack.c.h.b16 %v521
        %v1205 = vunpack.c.l.b16 %v522
        %v1206 = vunpack.c.h.b16 %v522
        %v1207 = vunpack.c.l.b16 %v523
        %v1208 = vunpack.c.h.b16 %v523
        %v1209 = vunpack.c.l.b16 %v524
        %v1210 = vunpack.c.h.b16 %v524
        %v1211 = vunpack.c.l.b16 %v525
        %v1212 = vunpack.c.h.b16 %v525
        %v1213 = vunpack.c.l.b16 %v526
        %v1214 = vunpack.c.h.b16 %v526
        %v1215 = vunpack.c.l.b16 %v527
        %v1216 = vunpack.c.h.b16 %v527
        %v1217 = vunpack.c.l.b16 %v528
        %v1218 = vunpack.c.h.b16 %v528
        %v1219 = vunpack.c.l.b16 %v529
        %v1220 = vunpack.c.h.b16 %v529
        %v1221 = vunpack.c.l.b16 %v530
        %v1222 = vunpack.c.h.b16 %v530
        %v1223 = vunpack.c.l.b16 %v531
        %v1224 = vunpack.c.h.b16 %v531
        %v1225 = vunpack.c.l.b16 %v532
        %v1226 = vunpack.c.h.b16 %v532
        %v1227 = vunpack.c.l.b16 %v533
        %v1228 = vunpack.c.h.b16 %v533
        %v1229 = vunpack.c.l.b16 %v534
        %v1230 = vunpack.c.h.b16 %v534
        %v1231 = vunpack.c.l.b16 %v535
        %v1232 = vunpack.c.h.b16 %v535
        %v1233 = vunpack.c.l.b16 %v536
        %v1234 = vunpack.c.h.b16 %v536
        %v1235 = vunpack.c.l.b16 %v537
        %v1236 = vunpack.c.h.b16 %v537
        %v1237 = vunpack.c.l.b16 %v538
        %v1238 = vunpack.c.h.b16 %v538
        %v1239 = vunpack.c.l.b16 %v539
        %v1240 = vunpack.c.h.b16 %v539
        %v1241 = vunpack.c.l.b16 %v540
        %v1242 = vunpack.c.h.b16 %v540
        %v1243 = vunpack.c.l.b16 %v541
        %v1244 = vunpack.c.h.b16 %v541
        %v1245 = vunpack.c.l.b16 %v542
        %v1246 = vunpack.c.h.b16 %v542
        %v1247 = vunpack.c.l.b16 %v543
        %v1248 = vunpack.c.h.b16 %v543
        %v1249 = vunpack.c.l.b16 %v544
        %v1250 = vunpack.c.h.b16 %v544
        %v1251 = vunpack.c.l.b16 %v545
        %v1252 = vunpack.c.h.b16 %v545
        %v1253 = vunpack.c.l.b16 %v546
        %v1254 = vunpack.c.h.b16 %v546
        %v1255 = vunpack.c.l.b16 %v547
        %v1256 = vunpack.c.h.b16 %v547
        %v1257 = vunpack.c.l.b16 %v548
        %v1258 = vunpack.c.h.b16 %v548
        %v1259 = vunpack.c.l.b16 %v549
        %v1260 = vunpack.c.h.b16 %v549
        %v1261 = vunpack.c.l.b16 %v550
        %v1262 = vunpack.c.h.b16 %v550
        %v1263 = vunpack.c.l.b16 %v551
        %v1264 = vunpack.c.h.b16 %v551
        %v1265 = vunpack.c.l.b16 %v552
        %v1266 = vunpack.c.h.b16 %v552
        %v1267 = vunpack.c.l.b16 %v553
        %v1268 = vunpack.c.h.b16 %v553
        %v1269 = vunpack.c.l.b16 %v554
        %v1270 = vunpack.c.h.b16 %v554
        %v1271 = vunpack.c.l.b16 %v555
        %v1272 = vunpack.c.h.b16 %v555
        %v1273 = vunpack.c.l.b16 %v556
        %v1274 = vunpack.c.h.b16 %v556
        %v1275 = vunpack.c.l.b16 %v557
        %v1276 = vunpack.c.h.b16 %v557
        %v1277 = vunpack.c.l.b16 %v558
        %v1278 = vunpack.c.h.b16 %v558
        %v1279 = vunpack.c.l.b16 %v559
        %v1280 = vunpack.c.h.b16 %v559
        %v1281 = vunpack.c.l.b16 %v560
        %v1282 = vunpack.c.h.b16 %v560
        %v1283 = vunpack.c.l.b16 %v561
        %v1284 = vunpack.c.h.b16 %v561
        %v1285 = vunpack.c.l.b16 %v562
        %v1286 = vunpack.c.h.b16 %v562
        %v1287 = vunpack.c.l.b16 %v563
        %v1288 = vunpack.c.h.b16 %v563
        %v1289 = vunpack.c.l.b16 %v564
        %v1290 = vunpack.c.h.b16 %v564
        %v1291 = vunpack.c.l.b16 %v565
        %v1292 = vunpack.c.h.b16 %v565
        %v1293 = vunpack.c.l.b16 %v566
        %v1294 = vunpack.c.h.b16 %v566
        %v1295 = vunpack.c.l.b16 %v567
        %v1296 = vunpack.c.h.b16 %v567
        %v1297 = vunpack.c.l.b16 %v568
        %v1298 = vunpack.c.h.b16 %v568
        %v1299 = vunpack.c.l.b16 %v569
        %v1300 = vunpack.c.h.b16 %v569
        %v1301 = vunpack.c.l.b16 %v570
        %v1302 = vunpack.c.h.b16 %v570
        %v1303 = vunpack.c.l.b16 %v571
        %v1304 = vunpack.c.h.b16 %v571
        %v1305 = vunpack.c.l.b16 %v572
        %v1306 = vunpack.c.h.b16 %v572
        %v1307 = vunpack.c.l.b16 %v573
        %v1308 = vunpack.c.h.b16 %v573
        %v1309 = vunpack.c.l.b16 %v574
        %v1310 = vunpack.c.h.b16 %v574
        %v1311 = vunpack.c.l.b16 %v575
        %v1312 = vunpack.c.h.b16 %v575
        %v1313 = vunpack.c.l.b16 %v576
        %v1314 = vunpack.c.h.b16 %v576
        %v1315 = vunpack.c.l.b16 %v577
        %v1316 = vunpack.c.h.b16 %v577
        %v1317 = vunpack.c.l.b16 %v578
        %v1318 = vunpack.c.h.b16 %v578
        %v1319 = vunpack.c.l.b16 %v579
        %v1320 = vunpack.c.h.b16 %v579
        %v1321 = vunpack.c.l.b16 %v580
        %v1322 = vunpack.c.h.b16 %v580
        %v1323 = vunpack.c.l.b16 %v581
        %v1324 = vunpack.c.h.b16 %v581
        %v1325 = vunpack.c.l.b16 %v582
        %v1326 = vunpack.c.h.b16 %v582
        %v1327 = vunpack.c.l.b16 %v583
        %v1328 = vunpack.c.h.b16 %v583
        %v1329 = vunpack.c.l.b16 %v584
        %v1330 = vunpack.c.h.b16 %v584
        %v1331 = vunpack.c.l.b16 %v585
        %v1332 = vunpack.c.h.b16 %v585
        %v1333 = vunpack.c.l.b16 %v586
        %v1334 = vunpack.c.h.b16 %v586
        %v1335 = vunpack.c.l.b16 %v587
        %v1336 = vunpack.c.h.b16 %v587
        %v1337 = vunpack.c.l.b16 %v588
        %v1338 = vunpack.c.h.b16 %v588
        %v1339 = vunpack.c.l.b16 %v589
        %v1340 = vunpack.c.h.b16 %v589
        %v1341 = vunpack.c.l.b16 %v590
        %v1342 = vunpack.c.h.b16 %v590
        %v1343 = vunpack.c.l.b16 %v591
        %v1344 = vunpack.c.h.b16 %v591
        %v1345 = vunpack.c.l.b16 %v592
        %v1346 = vunpack.c.h.b16 %v592
        %v1347 = vunpack.c.l.b16 %v593
        %v1348 = vunpack.c.h.b16 %v593
        %v1349 = vunpack.c.l.b16 %v594
        %v1350 = vunpack.c.h.b16 %v594
        %v1351 = vunpack.c.l.b16 %v595
        %v1352 = vunpack.c.h.b16 %v595
        %v1353 = vunpack.c.l.b16 %v596
        %v1354 = vunpack.c.h.b16 %v596
        %v1355 = vunpack.c.l.b16 %v597
        %v1356 = vunpack.c.h.b16 %v597
        %v1357 = vunpack.c.l.b16 %v598
        %v1358 = vunpack.c.h.b16 %v598
        %v1359 = vunpack.c.l.b16 %v599
        %v1360 = vunpack.c.h.b16 %v599
        %v1361 = vunpack.c.l.b16 %v600
        %v1362 = vunpack.c.h.b16 %v600
        %v1363 = vunpack.c.l.b16 %v601
        %v1364 = vunpack.c.h.b16 %v601
        %v1365 = vunpack.c.l.b16 %v602
        %v1366 = vunpack.c.h.b16 %v602
        %v1367 = vunpack.c.l.b16 %v603
        %v1368 = vunpack.c.h.b16 %v603
        %v1369 = vunpack.c.l.b16 %v604
        %v1370 = vunpack.c.h.b16 %v604
        %v1371 = vunpack.c.l.b16 %v605
        %v1372 = vunpack.c.h.b16 %v605
        %v1373 = vunpack.c.l.b16 %v606
        %v1374 = vunpack.c.h.b16 %v606
        %v1375 = vunpack.c.l.b16 %v607
        %v1376 = vunpack.c.h.b16 %v607
        %v1377 = vunpack.c.l.b16 %v608
        %v1378 = vunpack.c.h.b16 %v608
        %v1379 = vunpack.c.l.b16 %v609
        %v1380 = vunpack.c.h.b16 %v609
        %v1381 = vunpack.c.l.b16 %v610
        %v1382 = vunpack.c.h.b16 %v610
        %v1383 = vunpack.c.l.b16 %v611
        %v1384 = vunpack.c.h.b16 %v611
        %v1385 = vunpack.c.l.b16 %v612
        %v1386 = vunpack.c.h.b16 %v612
        %v1387 = vunpack.c.l.b16 %v613
        %v1388 = vunpack.c.h.b16 %v613
        %v1389 = vunpack.c.l.b16 %v614
        %v1390 = vunpack.c.h.b16 %v614
        %v1391 = vunpack.c.l.b16 %v615
        %v1392 = vunpack.c.h.b16 %v615
        %v1393 = vunpack.c.l.b16 %v616
        %v1394 = vunpack.c.h.b16 %v616
        %v1395 = vunpack.c.l.b16 %v617
        %v1396 = vunpack.c.h.b16 %v617
        %v1397 = vunpack.c.l.b16 %v618
        %v1398 = vunpack.c.h.b16 %v618
        %v1399 = vunpack.c.l.b16 %v619
        %v1400 = vunpack.c.h.b16 %v619
        %v1401 = vunpack.c.l.b16 %v620
        %v1402 = vunpack.c.h.b16 %v620
        %v1403 = vunpack.c.l.b16 %v621
        %v1404 = vunpack.c.h.b16 %v621
        %v1405 = vunpack.c.l.b16 %v622
        %v1406 = vunpack.c.h.b16 %v622
        %v1407 = vunpack.c.l.b16 %v623
        %v1408 = vunpack.c.h.b16 %v623
        %v1409 = vpack.c.b16 %v931, %v929
        %v1410 = vpack.c.b16 %v932, %v930
        %v1411 = vpack.c.b16 %v935, %v933
        %v1412 = vpack.c.b16 %v936, %v934
        %v1413 = vpack.c.b16 %v939, %v937
        %v1414 = vpack.c.b16 %v940, %v938
        %v1415 = vpack.c.b16 %v943, %v941
        %v1416 = vpack.c.b16 %v944, %v942
        %v1417 = vpack.c.b16 %v947, %v945
        %v1418 = vpack.c.b16 %v948, %v946
        %v1419 = vpack.c.b16 %v951, %v949
        %v1420 = vpack.c.b16 %v952, %v950
        %v1421 = vpack.c.b16 %v955, %v953
        %v1422 = vpack.c.b16 %v956, %v954
        %v1423 = vpack.c.b16 %v959, %v957
        %v1424 = vpack.c.b16 %v960, %v958
        %v1425 = vpack.c.b16 %v963, %v961
        %v1426 = vpack.c.b16 %v964, %v962
        %v1427 = vpack.c.b16 %v967, %v965
        %v1428 = vpack.c.b16 %v968, %v966
        %v1429 = vpack.c.b16 %v971, %v969
        %v1430 = vpack.c.b16 %v972, %v970
        %v1431 = vpack.c.b16 %v975, %v973
        %v1432 = vpack.c.b16 %v976, %v974
        %v1433 = vpack.c.b16 %v979, %v977
        %v1434 = vpack.c.b16 %v980, %v978
        %v1435 = vpack.c.b16 %v983, %v981
        %v1436 = vpack.c.b16 %v984, %v982
        %v1437 = vpack.c.b16 %v987, %v985
        %v1438 = vpack.c.b16 %v988, %v986
        %v1439 = vpack.c.b16 %v991, %v989
        %v1440 = vpack.c.b16 %v992, %v990
        %v1441 = vpack.c.b16 %v995, %v993
        %v1442 = vpack.c.b16 %v996, %v994
        %v1443 = vpack.c.b16 %v999, %v997
        %v1444 = vpack.c.b16 %v1000, %v998
        %v1445 = vpack.c.b16 %v1003, %v1001
        %v1446 = vpack.c.b16 %v1004, %v1002
        %v1447 = vpack.c.b16 %v1007, %v1005
        %v1448 = vpack.c.b16 %v1008, %v1006
        %v1449 = vpack.c.b16 %v1011, %v1009
        %v1450 = vpack.c.b16 %v1012, %v1010
        %v1451 = vpack.c.b16 %v1015, %v1013
        %v1452 = vpack.c.b16 %v1016, %v1014
        %v1453 = vpack.c.b16 %v1019, %v1017
        %v1454 = vpack.c.b16 %v1020, %v1018
        %v1455 = vpack.c.b16 %v1023, %v1021
        %v1456 = vpack.c.b16 %v1024, %v1022
        %v1457 = vpack.c.b16 %v1027, %v1025
        %v1458 = vpack.c.b16 %v1028, %v1026
        %v1459 = vpack.c.b16 %v1031, %v1029
        %v1460 = vpack.c.b16 %v1032, %v1030
        %v1461 = vpack.c.b16 %v1035, %v1033
        %v1462 = vpack.c.b16 %v1036, %v1034
        %v1463 = vpack.c.b16 %v1039, %v1037
        %v1464 = vpack.c.b16 %v1040, %v1038
        %v1465 = vpack.c.b16 %v1043, %v1041
        %v1466 = vpack.c.b16 %v1044, %v1042
        %v1467 = vpack.c.b16 %v1047, %v1045
        %v1468 = vpack.c.b16 %v1048, %v1046
        %v1469 = vpack.c.b16 %v1051, %v1049
        %v1470 = vpack.c.b16 %v1052, %v1050
        %v1471 = vpack.c.b16 %v1055, %v1053
        %v1472 = vpack.c.b16 %v1056, %v1054
        %v1473 = vpack.c.b16 %v1059, %v1057
        %v1474 = vpack.c.b16 %v1060, %v1058
        %v1475 = vpack.c.b16 %v1063, %v1061
        %v1476 = vpack.c.b16 %v1064, %v1062
        %v1477 = vpack.c.b16 %v1067, %v1065
        %v1478 = vpack.c.b16 %v1068, %v1066
        %v1479 = vpack.c.b16 %v1071, %v1069
        %v1480 = vpack.c.b16 %v1072, %v1070
        %v1481 = vpack.c.b16 %v1075, %v1073
        %v1482 = vpack.c.b16 %v1076, %v1074
        %v1483 = vpack.c.b16 %v1079, %v1077
        %v1484 = vpack.c.b16 %v1080, %v1078
        %v1485 = vpack.c.b16 %v1083, %v1081
        %v1486 = vpack.c.b16 %v1084, %v1082
        %v1487 = vpack.c.b16 %v1087, %v1085
        %v1488 = vpack.c.b16 %v1088, %v1086
        %v1489 = vpack.c.b16 %v1091, %v1089
        %v1490 = vpack.c.b16 %v1092, %v1090
        %v1491 = vpack.c.b16 %v1095, %v1093
        %v1492 = vpack.c.b16 %v1096, %v1094
        %v1493 = vpack.c.b16 %v1099, %v1097
        %v1494 = vpack.c.b16 %v1100, %v1098
        %v1495 = vpack.c.b16 %v1103, %v1101
        %v1496 = vpack.c.b16 %v1104, %v1102
        %v1497 = vpack.c.b16 %v1107, %v1105
        %v1498 = vpack.c.b16 %v1108, %v1106
        %v1499 = vpack.c.b16 %v1111, %v1109
        %v1500 = vpack.c.b16 %v1112, %v1110
        %v1501 = vpack.c.b16 %v1115, %v1113
        %v1502 = vpack.c.b16 %v1116, %v1114
        %v1503 = vpack.c.b16 %v1119, %v1117
        %v1504 = vpack.c.b16 %v1120, %v1118
        %v1505 = vpack.c.b16 %v1123, %v1121
        %v1506 = vpack.c.b16 %v1124, %v1122
        %v1507 = vpack.c.b16 %v1127, %v1125
        %v1508 = vpack.c.b16 %v1128, %v1126
        %v1509 = vpack.c.b16 %v1131, %v1129
        %v1510 = vpack.c.b16 %v1132, %v1130
        %v1511 = vpack.c.b16 %v1135, %v1133
        %v1512 = vpack.c.b16 %v1136, %v1134
        %v1513 = vpack.c.b16 %v1139, %v1137
        %v1514 = vpack.c.b16 %v1140, %v1138
        %v1515 = vpack.c.b16 %v1143, %v1141
        %v1516 = vpack.c.b16 %v1144, %v1142
        %v1517 = vpack.c.b16 %v1147, %v1145
        %v1518 = vpack.c.b16 %v1148, %v1146
        %v1519 = vpack.c.b16 %v1151, %v1149
        %v1520 = vpack.c.b16 %v1152, %v1150
        %v1521 = vpack.c.b16 %v1155, %v1153
        %v1522 = vpack.c.b16 %v1156, %v1154
        %v1523 = vpack.c.b16 %v1159, %v1157
        %v1524 = vpack.c.b16 %v1160, %v1158
        %v1525 = vpack.c.b16 %v1163, %v1161
        %v1526 = vpack.c.b16 %v1164, %v1162
        %v1527 = vpack.c.b16 %v1167, %v1165
        %v1528 = vpack.c.b16 %v1168, %v1166
        %v1529 = vpack.c.b16 %v1171, %v1169
        %v1530 = vpack.c.b16 %v1172, %v1170
        %v1531 = vpack.c.b16 %v1175, %v1173
        %v1532 = vpack.c.b16 %v1176, %v1174
        %v1533 = vpack.c.b16 %v1179, %v1177
        %v1534 = vpack.c.b16 %v1180, %v1178
        %v1535 = vpack.c.b16 %v1183, %v1181
        %v1536 = vpack.c.b16 %v1184, %v1182
        %v1537 = vpack.c.b16 %v1187, %v1185
        %v1538 = vpack.c.b16 %v1188, %v1186
        %v1539 = vpack.c.b16 %v1191, %v1189
        %v1540 = vpack.c.b16 %v1192, %v1190
        %v1541 = vpack.c.b16 %v1195, %v1193
        %v1542 = vpack.c.b16 %v1196, %v1194
        %v1543 = vpack.c.b16 %v1199, %v1197
        %v1544 = vpack.c.b16 %v1200, %v1198
        %v1545 = vpack.c.b16 %v1203, %v1201
        %v1546 = vpack.c.b16 %v1204, %v1202
        %v1547 = vpack.c.b16 %v1207, %v1205
        %v1548 = vpack.c.b16 %v1208, %v1206
        %v1549 = vpack.c.b16 %v1211, %v1209
        %v1550 = vpack.c.b16 %v1212, %v1210
        %v1551 = vpack.c.b16 %v1215, %v1213
        %v1552 = vpack.c.b16 %v1216, %v1214
        %v1553 = vpack.c.b16 %v1219, %v1217
        %v1554 = vpack.c.b16 %v1220, %v1218
        %v1555 = vpack.c.b16 %v1223, %v1221
        %v1556 = vpack.c.b16 %v1224, %v1222
        %v1557 = vpack.c.b16 %v1227, %v1225
        %v1558 = vpack.c.b16 %v1228, %v1226
        %v1559 = vpack.c.b16 %v1231, %v1229
        %v1560 = vpack.c.b16 %v1232, %v1230
        %v1561 = vpack.c.b16 %v1235, %v1233
        %v1562 = vpack.c.b16 %v1236, %v1234
        %v1563 = vpack.c.b16 %v1239, %v1237
        %v1564 = vpack.c.b16 %v1240, %v1238
        %v1565 = vpack.c.b16 %v1243, %v1241
        %v1566 = vpack.c.b16 %v1244, %v1242
        %v1567 = vpack.c.b16 %v1247, %v1245
        %v1568 = vpack.c.b16 %v1248, %v1246
        %v1569 = vpack.c.b16 %v1251, %v1249
        %v1570 = vpack.c.b16 %v1252, %v1250
        %v1571 = vpack.c.b16 %v1255, %v1253
        %v1572 = vpack.c.b16 %v1256, %v1254
        %v1573 = vpack.c.b16 %v1259, %v1257
        %v1574 = vpack.c.b16 %v1260, %v1258
        %v1575 = vpack.c.b16 %v1263, %v1261
        %v1576 = vpack.c.b16 %v1264, %v1262
        %v1577 = vpack.c.b16 %v1267, %v1265
        %v1578 = vpack.c.b16 %v1268, %v1266
        %v1579 = vpack.c.b16 %v1271, %v1269
        %v1580 = vpack.c.b16 %v1272, %v1270
        %v1581 = vpack.c.b16 %v1275, %v1273
        %v1582 = vpack.c.b16 %v1276, %v1274
        %v1583 = vpack.c.b16 %v1279, %v1277
        %v1584 = vpack.c.b16 %v1280, %v1278
        %v1585 = vpack.c.b16 %v1283, %v1281
        %v1586 = vpack.c.b16 %v1284, %v1282
        %v1587 = vpack.c.b16 %v1287, %v1285
        %v1588 = vpack.c.b16 %v1288, %v1286
        %v1589 = vpack.c.b16 %v1291, %v1289
        %v1590 = vpack.c.b16 %v1292, %v1290
        %v1591 = vpack.c.b16 %v1295, %v1293
        %v1592 = vpack.c.b16 %v1296, %v1294
        %v1593 = vpack.c.b16 %v1299, %v1297
        %v1594 = vpack.c.b16 %v1300, %v1298
        %v1595 = vpack.c.b16 %v1303, %v1301
        %v1596 = vpack.c.b16 %v1304, %v1302
        %v1597 = vpack.c.b16 %v1307, %v1305
        %v1598 = vpack.c.b16 %v1308, %v1306
        %v1599 = vpack.c.b16 %v1311, %v1309
        %v1600 = vpack.c.b16 %v1312, %v1310
        %v1601 = vpack.c.b16 %v1315, %v1313
        %v1602 = vpack.c.b16 %v1316, %v1314
        %v1603 = vpack.c.b16 %v1319, %v1317
        %v1604 = vpack.c.b16 %v1320, %v1318
        %v1605 = vpack.c.b16 %v1323, %v1321
        %v1606 = vpack.c.b16 %v1324, %v1322
        %v1607 = vpack.c.b16 %v1327, %v1325
        %v1608 = vpack.c.b16 %v1328, %v1326
        %v1609 = vpack.c.b16 %v1331, %v1329
        %v1610 = vpack.c.b16 %v1332, %v1330
        %v1611 = vpack.c.b16 %v1335, %v1333
        %v1612 = vpack.c.b16 %v1336, %v1334
        %v1613 = vpack.c.b16 %v1339, %v1337
        %v1614 = vpack.c.b16 %v1340, %v1338
        %v1615 = vpack.c.b16 %v1343, %v1341
        %v1616 = vpack.c.b16 %v1344, %v1342
        %v1617 = vpack.c.b16 %v1347, %v1345
        %v1618 = vpack.c.b16 %v1348, %v1346
        %v1619 = vpack.c.b16 %v1351, %v1349
        %v1620 = vpack.c.b16 %v1352, %v1350
        %v1621 = vpack.c.b16 %v1355, %v1353
        %v1622 = vpack.c.b16 %v1356, %v1354
        %v1623 = vpack.c.b16 %v1359, %v1357
        %v1624 = vpack.c.b16 %v1360, %v1358
        %v1625 = vpack.c.b16 %v1363, %v1361
        %v1626 = vpack.c.b16 %v1364, %v1362
        %v1627 = vpack.c.b16 %v1367, %v1365
        %v1628 = vpack.c.b16 %v1368, %v1366
        %v1629 = vpack.c.b16 %v1371, %v1369
        %v1630 = vpack.c.b16 %v1372, %v1370
        %v1631 = vpack.c.b16 %v1375, %v1373
        %v1632 = vpack.c.b16 %v1376, %v1374
        %v1633 = vpack.c.b16 %v1379, %v1377
        %v1634 = vpack.c.b16 %v1380, %v1378
        %v1635 = vpack.c.b16 %v1383, %v1381
        %v1636 = vpack.c.b16 %v1384, %v1382
        %v1637 = vpack.c.b16 %v1387, %v1385
        %v1638 = vpack.c.b16 %v1388, %v1386
        %v1639 = vpack.c.b16 %v1391, %v1389
        %v1640 = vpack.c.b16 %v1392, %v1390
        %v1641 = vpack.c.b16 %v1395, %v1393
        %v1642 = vpack.c.b16 %v1396, %v1394
        %v1643 = vpack.c.b16 %v1399, %v1397
        %v1644 = vpack.c.b16 %v1400, %v1398
        %v1645 = vpack.c.b16 %v1403, %v1401
        %v1646 = vpack.c.b16 %v1404, %v1402
        %v1647 = vpack.c.b16 %v1407, %v1405
        %v1648 = vpack.c.b16 %v1408, %v1406
        %1889 = vmatprep.subr.bf16.mxu0 %v1410
        %1890 = vmatpush1.bf16.msra.mxu0 %v1409
        %1891 = vmatprep.subr.bf16.mxu0 %v1412
        %1892 = vmatpush1.bf16.msra.mxu0 %v1411
        %1893 = vmatprep.subr.bf16.mxu0 %v1414
        %1894 = vmatpush1.bf16.msra.mxu0 %v1413
        %1895 = vmatprep.subr.bf16.mxu0 %v1416
        %1896 = vmatpush1.bf16.msra.mxu0 %v1415
        %1897 = vmatprep.subr.bf16.mxu0 %v1418
        %1898 = vmatpush1.bf16.msra.mxu0 %v1417
        %1899 = vmatprep.subr.bf16.mxu0 %v1420
        %1900 = vmatpush1.bf16.msra.mxu0 %v1419
        %1901 = vmatprep.subr.bf16.mxu0 %v1422
        %1902 = vmatpush1.bf16.msra.mxu0 %v1421
        %1903 = vmatprep.subr.bf16.mxu0 %v1424
        %1904 = vmatpush1.bf16.msra.mxu0 %v1423
        %1905 = vmatprep.subr.bf16.mxu0 %v1426
        %1906 = vmatpush1.bf16.msra.mxu0 %v1425
        %1907 = vmatprep.subr.bf16.mxu0 %v1428
        %1908 = vmatpush1.bf16.msra.mxu0 %v1427
        %1909 = vmatprep.subr.bf16.mxu0 %v1430
        %1910 = vmatpush1.bf16.msra.mxu0 %v1429
        %1911 = vmatprep.subr.bf16.mxu0 %v1432
        %1912 = vmatpush1.bf16.msra.mxu0 %v1431
        %1913 = vmatprep.subr.bf16.mxu0 %v1434
        %1914 = vmatpush1.bf16.msra.mxu0 %v1433
        %1915 = vmatprep.subr.bf16.mxu0 %v1436
        %1916 = vmatpush1.bf16.msra.mxu0 %v1435
        %1917 = vmatprep.subr.bf16.mxu0 %v1438
        %1918 = vmatpush1.bf16.msra.mxu0 %v1437
        %1919 = vmatprep.subr.bf16.mxu0 %v1440
        %1920 = vmatpush1.bf16.msra.mxu0 %v1439
        %1921 = vmatprep.mubr.bf16.mxu0 %v660
        %1922 = vmatmul.mubr.bf16.gmra.mrb[0].mxu0 %v659
        %v1923 = vpop.f32.mrb[0].mxu0
        %v1924 = vadd.f32 %v629, %v1923
        %v1925 = vpop.f32.mrb[0].mxu0
        %v1926 = vadd.f32 %v633, %v1925
        %v1927 = vpop.f32.mrb[0].mxu0
        %v1928 = vpop.f32.mrb[0].mxu0
        %1929 = vdwg.mxu0
        %1930 = vmatprep.subr.bf16.mxu0 %v1442
        %1931 = vmatpush1.bf16.msra.mxu0 %v1441
        %1932 = vmatprep.subr.bf16.mxu0 %v1444
        %1933 = vmatpush1.bf16.msra.mxu0 %v1443
        %1934 = vmatprep.subr.bf16.mxu0 %v1446
        %1935 = vmatpush1.bf16.msra.mxu0 %v1445
        %1936 = vmatprep.subr.bf16.mxu0 %v1448
        %1937 = vmatpush1.bf16.msra.mxu0 %v1447
        %1938 = vmatprep.subr.bf16.mxu0 %v1450
        %1939 = vmatpush1.bf16.msra.mxu0 %v1449
        %1940 = vmatprep.subr.bf16.mxu0 %v1452
        %1941 = vmatpush1.bf16.msra.mxu0 %v1451
        %1942 = vmatprep.subr.bf16.mxu0 %v1454
        %1943 = vmatpush1.bf16.msra.mxu0 %v1453
        %1944 = vmatprep.subr.bf16.mxu0 %v1456
        %1945 = vmatpush1.bf16.msra.mxu0 %v1455
        %1946 = vmatprep.subr.bf16.mxu0 %v1458
        %1947 = vmatpush1.bf16.msra.mxu0 %v1457
        %1948 = vmatprep.subr.bf16.mxu0 %v1460
        %1949 = vmatpush1.bf16.msra.mxu0 %v1459
        %1950 = vmatprep.subr.bf16.mxu0 %v1462
        %1951 = vmatpush1.bf16.msra.mxu0 %v1461
        %1952 = vmatprep.subr.bf16.mxu0 %v1464
        %1953 = vmatpush1.bf16.msra.mxu0 %v1463
        %1954 = vmatprep.subr.bf16.mxu0 %v1466
        %1955 = vmatpush1.bf16.msra.mxu0 %v1465
        %1956 = vmatprep.subr.bf16.mxu0 %v1468
        %1957 = vmatpush1.bf16.msra.mxu0 %v1467
        %1958 = vmatprep.subr.bf16.mxu0 %v1470
        %1959 = vmatpush1.bf16.msra.mxu0 %v1469
        %1960 = vmatprep.subr.bf16.mxu0 %v1472
        %1961 = vmatpush1.bf16.msra.mxu0 %v1471
        %1962 = vmatprep.mubr.bf16.mxu0 %v662
        %1963 = vmatmul.mubr.bf16.gmra.mrb[0].mxu0 %v661
        %v1964 = vpop.f32.mrb[0].mxu0
        %v1965 = vadd.f32 %v1924, %v1964
        %v1966 = vpop.f32.mrb[0].mxu0
        %v1967 = vadd.f32 %v1926, %v1966
        %v1968 = vpop.f32.mrb[0].mxu0
        %v1969 = vpop.f32.mrb[0].mxu0
        %1970 = vdwg.mxu0
        %1971 = vmatprep.subr.bf16.mxu0 %v1474
        %1972 = vmatpush1.bf16.msra.mxu0 %v1473
        %1973 = vmatprep.subr.bf16.mxu0 %v1476
        %1974 = vmatpush1.bf16.msra.mxu0 %v1475
        %1975 = vmatprep.subr.bf16.mxu0 %v1478
        %1976 = vmatpush1.bf16.msra.mxu0 %v1477
        %1977 = vmatprep.subr.bf16.mxu0 %v1480
        %1978 = vmatpush1.bf16.msra.mxu0 %v1479
        %1979 = vmatprep.subr.bf16.mxu0 %v1482
        %1980 = vmatpush1.bf16.msra.mxu0 %v1481
        %1981 = vmatprep.subr.bf16.mxu0 %v1484
        %1982 = vmatpush1.bf16.msra.mxu0 %v1483
        %1983 = vmatprep.subr.bf16.mxu0 %v1486
        %1984 = vmatpush1.bf16.msra.mxu0 %v1485
        %1985 = vmatprep.subr.bf16.mxu0 %v1488
        %1986 = vmatpush1.bf16.msra.mxu0 %v1487
        %1987 = vmatprep.subr.bf16.mxu0 %v1490
        %1988 = vmatpush1.bf16.msra.mxu0 %v1489
        %1989 = vmatprep.subr.bf16.mxu0 %v1492
        %1990 = vmatpush1.bf16.msra.mxu0 %v1491
        %1991 = vmatprep.subr.bf16.mxu0 %v1494
        %1992 = vmatpush1.bf16.msra.mxu0 %v1493
        %1993 = vmatprep.subr.bf16.mxu0 %v1496
        %1994 = vmatpush1.bf16.msra.mxu0 %v1495
        %1995 = vmatprep.subr.bf16.mxu0 %v1498
        %1996 = vmatpush1.bf16.msra.mxu0 %v1497
        %1997 = vmatprep.subr.bf16.mxu0 %v1500
        %1998 = vmatpush1.bf16.msra.mxu0 %v1499
        %1999 = vmatprep.subr.bf16.mxu0 %v1502
        %2000 = vmatpush1.bf16.msra.mxu0 %v1501
        %2001 = vmatprep.subr.bf16.mxu0 %v1504
        %2002 = vmatpush1.bf16.msra.mxu0 %v1503
        %2003 = vmatprep.mubr.bf16.mxu0 %v664
        %2004 = vmatmul.mubr.bf16.gmra.mrb[0].mxu0 %v663
        %v2005 = vpop.f32.mrb[0].mxu0
        %v2006 = vadd.f32 %v1965, %v2005
        %v2007 = vpop.f32.mrb[0].mxu0
        %v2008 = vadd.f32 %v1967, %v2007
        %v2009 = vpop.f32.mrb[0].mxu0
        %v2010 = vpop.f32.mrb[0].mxu0
        %2011 = vdwg.mxu0
        %2012 = vmatprep.subr.bf16.mxu0 %v1506
        %2013 = vmatpush1.bf16.msra.mxu0 %v1505
        %2014 = vmatprep.subr.bf16.mxu0 %v1508
        %2015 = vmatpush1.bf16.msra.mxu0 %v1507
        %2016 = vmatprep.subr.bf16.mxu0 %v1510
        %2017 = vmatpush1.bf16.msra.mxu0 %v1509
        %2018 = vmatprep.subr.bf16.mxu0 %v1512
        %2019 = vmatpush1.bf16.msra.mxu0 %v1511
        %2020 = vmatprep.subr.bf16.mxu0 %v1514
        %2021 = vmatpush1.bf16.msra.mxu0 %v1513
        %2022 = vmatprep.subr.bf16.mxu0 %v1516
        %2023 = vmatpush1.bf16.msra.mxu0 %v1515
        %2024 = vmatprep.subr.bf16.mxu0 %v1518
        %2025 = vmatpush1.bf16.msra.mxu0 %v1517
        %2026 = vmatprep.subr.bf16.mxu0 %v1520
        %2027 = vmatpush1.bf16.msra.mxu0 %v1519
        %2028 = vmatprep.subr.bf16.mxu0 %v1522
        %2029 = vmatpush1.bf16.msra.mxu0 %v1521
        %2030 = vmatprep.subr.bf16.mxu0 %v1524
        %2031 = vmatpush1.bf16.msra.mxu0 %v1523
        %2032 = vmatprep.subr.bf16.mxu0 %v1526
        %2033 = vmatpush1.bf16.msra.mxu0 %v1525
        %2034 = vmatprep.subr.bf16.mxu0 %v1528
        %2035 = vmatpush1.bf16.msra.mxu0 %v1527
        %2036 = vmatprep.subr.bf16.mxu0 %v1530
        %2037 = vmatpush1.bf16.msra.mxu0 %v1529
        %2038 = vmatprep.subr.bf16.mxu0 %v1532
        %2039 = vmatpush1.bf16.msra.mxu0 %v1531
        %2040 = vmatprep.subr.bf16.mxu0 %v1534
        %2041 = vmatpush1.bf16.msra.mxu0 %v1533
        %2042 = vmatprep.subr.bf16.mxu0 %v1536
        %2043 = vmatpush1.bf16.msra.mxu0 %v1535
        %2044 = vmatprep.mubr.bf16.mxu0 %v666
        %2045 = vmatmul.mubr.bf16.gmra.mrb[0].mxu0 %v665
        %v2046 = vpop.f32.mrb[0].mxu0
        %v2047 = vadd.f32 %v2006, %v2046
        %v2048 = vpop.f32.mrb[0].mxu0
        %v2049 = vadd.f32 %v2008, %v2048
        %v2050 = vpop.f32.mrb[0].mxu0
        %v2051 = vpop.f32.mrb[0].mxu0
        %2052 = vdwg.mxu0
        %2053 = vmatprep.subr.bf16.mxu0 %v1538
        %2054 = vmatpush1.bf16.msra.mxu0 %v1537
        %2055 = vmatprep.subr.bf16.mxu0 %v1540
        %2056 = vmatpush1.bf16.msra.mxu0 %v1539
        %2057 = vmatprep.subr.bf16.mxu0 %v1542
        %2058 = vmatpush1.bf16.msra.mxu0 %v1541
        %2059 = vmatprep.subr.bf16.mxu0 %v1544
        %2060 = vmatpush1.bf16.msra.mxu0 %v1543
        %2061 = vmatprep.subr.bf16.mxu0 %v1546
        %2062 = vmatpush1.bf16.msra.mxu0 %v1545
        %2063 = vmatprep.subr.bf16.mxu0 %v1548
        %2064 = vmatpush1.bf16.msra.mxu0 %v1547
        %2065 = vmatprep.subr.bf16.mxu0 %v1550
        %2066 = vmatpush1.bf16.msra.mxu0 %v1549
        %2067 = vmatprep.subr.bf16.mxu0 %v1552
        %2068 = vmatpush1.bf16.msra.mxu0 %v1551
        %2069 = vmatprep.subr.bf16.mxu0 %v1554
        %2070 = vmatpush1.bf16.msra.mxu0 %v1553
        %2071 = vmatprep.subr.bf16.mxu0 %v1556
        %2072 = vmatpush1.bf16.msra.mxu0 %v1555
        %2073 = vmatprep.subr.bf16.mxu0 %v1558
        %2074 = vmatpush1.bf16.msra.mxu0 %v1557
        %2075 = vmatprep.subr.bf16.mxu0 %v1560
        %2076 = vmatpush1.bf16.msra.mxu0 %v1559
        %2077 = vmatprep.subr.bf16.mxu0 %v1562
        %2078 = vmatpush1.bf16.msra.mxu0 %v1561
        %2079 = vmatprep.subr.bf16.mxu0 %v1564
        %2080 = vmatpush1.bf16.msra.mxu0 %v1563
        %2081 = vmatprep.subr.bf16.mxu0 %v1566
        %2082 = vmatpush1.bf16.msra.mxu0 %v1565
        %2083 = vmatprep.subr.bf16.mxu0 %v1568
        %2084 = vmatpush1.bf16.msra.mxu0 %v1567
        %2085 = vmatprep.mubr.bf16.mxu0 %v668
        %2086 = vmatmul.mubr.bf16.gmra.mrb[0].mxu0 %v667
        %v2087 = vpop.f32.mrb[0].mxu0
        %v2088 = vadd.f32 %v2047, %v2087
        %v2089 = vpop.f32.mrb[0].mxu0
        %v2090 = vadd.f32 %v2049, %v2089
        %v2091 = vpop.f32.mrb[0].mxu0
        %v2092 = vpop.f32.mrb[0].mxu0
        %2093 = vdwg.mxu0
        %2094 = vmatprep.subr.bf16.mxu0 %v1570
        %2095 = vmatpush1.bf16.msra.mxu0 %v1569
        %2096 = vmatprep.subr.bf16.mxu0 %v1572
        %2097 = vmatpush1.bf16.msra.mxu0 %v1571
        %2098 = vmatprep.subr.bf16.mxu0 %v1574
        %2099 = vmatpush1.bf16.msra.mxu0 %v1573
        %2100 = vmatprep.subr.bf16.mxu0 %v1576
        %2101 = vmatpush1.bf16.msra.mxu0 %v1575
        %2102 = vmatprep.subr.bf16.mxu0 %v1578
        %2103 = vmatpush1.bf16.msra.mxu0 %v1577
        %2104 = vmatprep.subr.bf16.mxu0 %v1580
        %2105 = vmatpush1.bf16.msra.mxu0 %v1579
        %2106 = vmatprep.subr.bf16.mxu0 %v1582
        %2107 = vmatpush1.bf16.msra.mxu0 %v1581
        %2108 = vmatprep.subr.bf16.mxu0 %v1584
        %2109 = vmatpush1.bf16.msra.mxu0 %v1583
        %2110 = vmatprep.subr.bf16.mxu0 %v1586
        %2111 = vmatpush1.bf16.msra.mxu0 %v1585
        %2112 = vmatprep.subr.bf16.mxu0 %v1588
        %2113 = vmatpush1.bf16.msra.mxu0 %v1587
        %2114 = vmatprep.subr.bf16.mxu0 %v1590
        %2115 = vmatpush1.bf16.msra.mxu0 %v1589
        %2116 = vmatprep.subr.bf16.mxu0 %v1592
        %2117 = vmatpush1.bf16.msra.mxu0 %v1591
        %2118 = vmatprep.subr.bf16.mxu0 %v1594
        %2119 = vmatpush1.bf16.msra.mxu0 %v1593
        %2120 = vmatprep.subr.bf16.mxu0 %v1596
        %2121 = vmatpush1.bf16.msra.mxu0 %v1595
        %2122 = vmatprep.subr.bf16.mxu0 %v1598
        %2123 = vmatpush1.bf16.msra.mxu0 %v1597
        %2124 = vmatprep.subr.bf16.mxu0 %v1600
        %2125 = vmatpush1.bf16.msra.mxu0 %v1599
        %2126 = vmatprep.mubr.bf16.mxu0 %v670
        %2127 = vmatmul.mubr.bf16.gmra.mrb[0].mxu0 %v669
        %v2128 = vpop.f32.mrb[0].mxu0
        %v2129 = vadd.f32 %v2088, %v2128
        %v2130 = vpop.f32.mrb[0].mxu0
        %v2131 = vadd.f32 %v2090, %v2130
        %v2132 = vpop.f32.mrb[0].mxu0
        %v2133 = vpop.f32.mrb[0].mxu0
        %2134 = vdwg.mxu0
        %2135 = vmatprep.subr.bf16.mxu0 %v1602
        %2136 = vmatpush1.bf16.msra.mxu0 %v1601
        %2137 = vmatprep.subr.bf16.mxu0 %v1604
        %2138 = vmatpush1.bf16.msra.mxu0 %v1603
        %2139 = vmatprep.subr.bf16.mxu0 %v1606
        %2140 = vmatpush1.bf16.msra.mxu0 %v1605
        %2141 = vmatprep.subr.bf16.mxu0 %v1608
        %2142 = vmatpush1.bf16.msra.mxu0 %v1607
        %2143 = vmatprep.subr.bf16.mxu0 %v1610
        %2144 = vmatpush1.bf16.msra.mxu0 %v1609
        %2145 = vmatprep.subr.bf16.mxu0 %v1612
        %2146 = vmatpush1.bf16.msra.mxu0 %v1611
        %2147 = vmatprep.subr.bf16.mxu0 %v1614
        %2148 = vmatpush1.bf16.msra.mxu0 %v1613
        %2149 = vmatprep.subr.bf16.mxu0 %v1616
        %2150 = vmatpush1.bf16.msra.mxu0 %v1615
        %2151 = vmatprep.subr.bf16.mxu0 %v1618
        %2152 = vmatpush1.bf16.msra.mxu0 %v1617
        %2153 = vmatprep.subr.bf16.mxu0 %v1620
        %2154 = vmatpush1.bf16.msra.mxu0 %v1619
        %2155 = vmatprep.subr.bf16.mxu0 %v1622
        %2156 = vmatpush1.bf16.msra.mxu0 %v1621
        %2157 = vmatprep.subr.bf16.mxu0 %v1624
        %2158 = vmatpush1.bf16.msra.mxu0 %v1623
        %2159 = vmatprep.subr.bf16.mxu0 %v1626
        %2160 = vmatpush1.bf16.msra.mxu0 %v1625
        %2161 = vmatprep.subr.bf16.mxu0 %v1628
        %2162 = vmatpush1.bf16.msra.mxu0 %v1627
        %2163 = vmatprep.subr.bf16.mxu0 %v1630
        %2164 = vmatpush1.bf16.msra.mxu0 %v1629
        %2165 = vmatprep.subr.bf16.mxu0 %v1632
        %2166 = vmatpush1.bf16.msra.mxu0 %v1631
        %2167 = vmatprep.mubr.bf16.mxu0 %v672
        %2168 = vmatmul.mubr.bf16.gmra.mrb[0].mxu0 %v671
        %v2169 = vpop.f32.mrb[0].mxu0
        %v2170 = vadd.f32 %v2129, %v2169
        %v2171 = vpop.f32.mrb[0].mxu0
        %v2172 = vadd.f32 %v2131, %v2171
        %v2173 = vpop.f32.mrb[0].mxu0
        %v2174 = vpop.f32.mrb[0].mxu0
        %2175 = vdwg.mxu0
        %2176 = vmatprep.subr.bf16.mxu0 %v1634
        %2177 = vmatpush1.bf16.msra.mxu0 %v1633
        %2178 = vmatprep.subr.bf16.mxu0 %v1636
        %2179 = vmatpush1.bf16.msra.mxu0 %v1635
        %2180 = vmatprep.subr.bf16.mxu0 %v1638
        %2181 = vmatpush1.bf16.msra.mxu0 %v1637
        %2182 = vmatprep.subr.bf16.mxu0 %v1640
        %2183 = vmatpush1.bf16.msra.mxu0 %v1639
        %2184 = vmatprep.subr.bf16.mxu0 %v1642
        %2185 = vmatpush1.bf16.msra.mxu0 %v1641
        %2186 = vmatprep.subr.bf16.mxu0 %v1644
        %2187 = vmatpush1.bf16.msra.mxu0 %v1643
        %2188 = vmatprep.subr.bf16.mxu0 %v1646
        %2189 = vmatpush1.bf16.msra.mxu0 %v1645
        %2190 = vmatprep.subr.bf16.mxu0 %v1648
        %2191 = vmatpush1.bf16.msra.mxu0 %v1647
        %2192 = vmatprep.subr.bf16.mxu0 0
        %2193 = vmatpush1.bf16.msra.mxu0 0
        %2194 = vmatprep.subr.bf16.mxu0 0
        %2195 = vmatpush1.bf16.msra.mxu0 0
        %2196 = vmatprep.subr.bf16.mxu0 0
        %2197 = vmatpush1.bf16.msra.mxu0 0
        %2198 = vmatprep.subr.bf16.mxu0 0
        %2199 = vmatpush1.bf16.msra.mxu0 0
        %2200 = vmatprep.subr.bf16.mxu0 0
        %2201 = vmatpush1.bf16.msra.mxu0 0
        %2202 = vmatprep.subr.bf16.mxu0 0
        %2203 = vmatpush1.bf16.msra.mxu0 0
        %2204 = vmatprep.subr.bf16.mxu0 0
        %2205 = vmatpush1.bf16.msra.mxu0 0
        %2206 = vmatprep.subr.bf16.mxu0 0
        %2207 = vmatpush1.bf16.msra.mxu0 0
        %2208 = vmatprep.mubr.bf16.mxu0 0
        %2209 = vmatmul.mubr.bf16.gmra.mrb[0].mxu0 %v673
        %v2210 = vpop.f32.mrb[0].mxu0
        %v2211 = vadd.f32 %v2170, %v2210
        %v2212 = vpop.f32.mrb[0].mxu0
        %v2213 = vadd.f32 %v2172, %v2212
        %v2214 = vpop.f32.mrb[0].mxu0
        %v2215 = vpop.f32.mrb[0].mxu0
        %2216 = vdwg.mxu0
        %v2217 = vmax.f32 %v2211, 0.0
        %v2218 = vmax.f32 %v2213, 0.0
        %v2219 = vpack.c.bf16 %v2217, %v2217
        %v2220 = vld [vmem:[%s319] sm:$0xff]
        %v2221 = vld [vmem:[%s319 + $0x8] sm:$0xff]
        %v2222 = vld [vmem:[%s319 + $0x10] sm:$0xff]
        %v2223 = vld [vmem:[%s319 + $0x18] sm:$0xff]
        %v2224 = vld [vmem:[%s319 + $0x20] sm:$0xff]
        %v2225 = vld [vmem:[%s319 + $0x28] sm:$0xff]
        %v2226 = vld [vmem:[%s319 + $0x30] sm:$0xff]
        %v2227 = vld [vmem:[%s319 + $0x38] sm:$0xff]
        %v2228 = vld [vmem:[%s319 + $0x40] sm:$0xff]
        %v2229 = vld [vmem:[%s319 + $0x48] sm:$0xff]
        %v2230 = vld [vmem:[%s319 + $0x50] sm:$0xff]
        %v2231 = vld [vmem:[%s319 + $0x58] sm:$0xff]
        %v2232 = vld [vmem:[%s319 + $0x60] sm:$0xff]
        %v2233 = vld [vmem:[%s319 + $0x68] sm:$0xff]
        %v2234 = vld [vmem:[%s319 + $0x70] sm:$0xff]
        %v2235 = vld [vmem:[%s319 + $0x78] sm:$0xff]
        %v2236 = vld [vmem:[%s328] sm:$0x3]
        %v2238 = vlaneseq
        %v2239 = vshrl.u32 %v2238, 7
        %v2240 = vsub.s32 0, %v2239
        %v2241 = vrot.slane %v2236, %v2240
        %v2242 = vlaneseq
        %v2243 = vshrl.u32 %v2242, 7
        %v2244 = vsub.s32 1, %v2243
        %v2245 = vrot.slane %v2236, %v2244
        %v2264 = vunpack.c.l.b16 %v2220
        %v2265 = vunpack.c.h.b16 %v2220
        %v2266 = vunpack.c.l.b16 %v2221
        %v2267 = vunpack.c.h.b16 %v2221
        %v2268 = vunpack.c.l.b16 %v2222
        %v2269 = vunpack.c.h.b16 %v2222
        %v2270 = vunpack.c.l.b16 %v2223
        %v2271 = vunpack.c.h.b16 %v2223
        %v2272 = vunpack.c.l.b16 %v2224
        %v2273 = vunpack.c.h.b16 %v2224
        %v2274 = vunpack.c.l.b16 %v2225
        %v2275 = vunpack.c.h.b16 %v2225
        %v2276 = vunpack.c.l.b16 %v2226
        %v2277 = vunpack.c.h.b16 %v2226
        %v2278 = vunpack.c.l.b16 %v2227
        %v2279 = vunpack.c.h.b16 %v2227
        %v2280 = vunpack.c.l.b16 %v2228
        %v2281 = vunpack.c.h.b16 %v2228
        %v2282 = vunpack.c.l.b16 %v2229
        %v2283 = vunpack.c.h.b16 %v2229
        %v2284 = vunpack.c.l.b16 %v2230
        %v2285 = vunpack.c.h.b16 %v2230
        %v2286 = vunpack.c.l.b16 %v2231
        %v2287 = vunpack.c.h.b16 %v2231
        %v2288 = vunpack.c.l.b16 %v2232
        %v2289 = vunpack.c.h.b16 %v2232
        %v2290 = vunpack.c.l.b16 %v2233
        %v2291 = vunpack.c.h.b16 %v2233
        %v2292 = vunpack.c.l.b16 %v2234
        %v2293 = vunpack.c.h.b16 %v2234
        %v2294 = vunpack.c.l.b16 %v2235
        %v2295 = vunpack.c.h.b16 %v2235
        %v2296 = vpack.c.b16 %v2266, %v2264
        %v2297 = vpack.c.b16 %v2267, %v2265
        %v2298 = vpack.c.b16 %v2270, %v2268
        %v2299 = vpack.c.b16 %v2271, %v2269
        %v2300 = vpack.c.b16 %v2274, %v2272
        %v2301 = vpack.c.b16 %v2275, %v2273
        %v2302 = vpack.c.b16 %v2278, %v2276
        %v2303 = vpack.c.b16 %v2279, %v2277
        %v2304 = vpack.c.b16 %v2282, %v2280
        %v2305 = vpack.c.b16 %v2283, %v2281
        %v2306 = vpack.c.b16 %v2286, %v2284
        %v2307 = vpack.c.b16 %v2287, %v2285
        %v2308 = vpack.c.b16 %v2290, %v2288
        %v2309 = vpack.c.b16 %v2291, %v2289
        %v2310 = vpack.c.b16 %v2294, %v2292
        %v2311 = vpack.c.b16 %v2295, %v2293
        %2328 = vmatprep.subr.bf16.mxu0 %v2297
        %2329 = vmatpush1.bf16.msra.mxu0 %v2296
        %2330 = vmatprep.subr.bf16.mxu0 %v2299
        %2331 = vmatpush1.bf16.msra.mxu0 %v2298
        %2332 = vmatprep.subr.bf16.mxu0 %v2301
        %2333 = vmatpush1.bf16.msra.mxu0 %v2300
        %2334 = vmatprep.subr.bf16.mxu0 %v2303
        %2335 = vmatpush1.bf16.msra.mxu0 %v2302
        %2336 = vmatprep.subr.bf16.mxu0 %v2305
        %2337 = vmatpush1.bf16.msra.mxu0 %v2304
        %2338 = vmatprep.subr.bf16.mxu0 %v2307
        %2339 = vmatpush1.bf16.msra.mxu0 %v2306
        %2340 = vmatprep.subr.bf16.mxu0 %v2309
        %2341 = vmatpush1.bf16.msra.mxu0 %v2308
        %2342 = vmatprep.subr.bf16.mxu0 %v2311
        %2343 = vmatpush1.bf16.msra.mxu0 %v2310
        %2344 = vmatprep.subr.bf16.mxu0 0
        %2345 = vmatpush1.bf16.msra.mxu0 0
        %2346 = vmatprep.subr.bf16.mxu0 0
        %2347 = vmatpush1.bf16.msra.mxu0 0
        %2348 = vmatprep.subr.bf16.mxu0 0
        %2349 = vmatpush1.bf16.msra.mxu0 0
        %2350 = vmatprep.subr.bf16.mxu0 0
        %2351 = vmatpush1.bf16.msra.mxu0 0
        %2352 = vmatprep.subr.bf16.mxu0 0
        %2353 = vmatpush1.bf16.msra.mxu0 0
        %2354 = vmatprep.subr.bf16.mxu0 0
        %2355 = vmatpush1.bf16.msra.mxu0 0
        %2356 = vmatprep.subr.bf16.mxu0 0
        %2357 = vmatpush1.bf16.msra.mxu0 0
        %2358 = vmatprep.subr.bf16.mxu0 0
        %2359 = vmatpush1.bf16.msra.mxu0 0
        %2360 = vmatprep.mubr.bf16.mxu0 0
        %2361 = vmatmul.mubr.bf16.gmra.mrb[0].mxu0 %v2219
        %v2362 = vpop.f32.mrb[0].mxu0
        %v2363 = vadd.f32 %v2241, %v2362
        %v2364 = vpop.f32.mrb[0].mxu0
        %v2365 = vadd.f32 %v2245, %v2364
        %v2366 = vpop.f32.mrb[0].mxu0
        %v2367 = vpop.f32.mrb[0].mxu0
        %2368 = vdwg.mxu0
        %2369 = vst [vmem:[%s369] sm:$0xff] %v2363
        %2370 = vst [vmem:[%s369 + $0x8] sm:$0xff] %v2365
        %v2371 = vpack.c.bf16 %v2218, %v2218
        %s2372 = scalar_lea.vmem %s319, 128 [#allocation8]
        %v2373 = vld [vmem:[%s2372] sm:$0xff]
        %v2374 = vld [vmem:[%s2372 + $0x8] sm:$0xff]
        %v2375 = vld [vmem:[%s2372 + $0x10] sm:$0xff]
        %v2376 = vld [vmem:[%s2372 + $0x18] sm:$0xff]
        %v2377 = vld [vmem:[%s2372 + $0x20] sm:$0xff]
        %v2378 = vld [vmem:[%s2372 + $0x28] sm:$0xff]
        %v2379 = vld [vmem:[%s2372 + $0x30] sm:$0xff]
        %v2380 = vld [vmem:[%s2372 + $0x38] sm:$0xff]
        %v2381 = vld [vmem:[%s2372 + $0x40] sm:$0xff]
        %v2382 = vld [vmem:[%s2372 + $0x48] sm:$0xff]
        %v2383 = vld [vmem:[%s2372 + $0x50] sm:$0xff]
        %v2384 = vld [vmem:[%s2372 + $0x58] sm:$0xff]
        %v2385 = vld [vmem:[%s2372 + $0x60] sm:$0xff]
        %v2386 = vld [vmem:[%s2372 + $0x68] sm:$0xff]
        %v2387 = vld [vmem:[%s2372 + $0x70] sm:$0xff]
        %v2388 = vld [vmem:[%s2372 + $0x78] sm:$0xff]
        %s2389 = scalar_lea.vmem %s328, 2 [#allocation10]
        %v2390 = vld [vmem:[%s2389] sm:$0x3]
        %v2392 = vlaneseq
        %v2393 = vshrl.u32 %v2392, 7
        %v2394 = vsub.s32 0, %v2393
        %v2395 = vrot.slane %v2390, %v2394
        %v2396 = vlaneseq
        %v2397 = vshrl.u32 %v2396, 7
        %v2398 = vsub.s32 1, %v2397
        %v2399 = vrot.slane %v2390, %v2398
        %v2418 = vunpack.c.l.b16 %v2373
        %v2419 = vunpack.c.h.b16 %v2373
        %v2420 = vunpack.c.l.b16 %v2374
        %v2421 = vunpack.c.h.b16 %v2374
        %v2422 = vunpack.c.l.b16 %v2375
        %v2423 = vunpack.c.h.b16 %v2375
        %v2424 = vunpack.c.l.b16 %v2376
        %v2425 = vunpack.c.h.b16 %v2376
        %v2426 = vunpack.c.l.b16 %v2377
        %v2427 = vunpack.c.h.b16 %v2377
        %v2428 = vunpack.c.l.b16 %v2378
        %v2429 = vunpack.c.h.b16 %v2378
        %v2430 = vunpack.c.l.b16 %v2379
        %v2431 = vunpack.c.h.b16 %v2379
        %v2432 = vunpack.c.l.b16 %v2380
        %v2433 = vunpack.c.h.b16 %v2380
        %v2434 = vunpack.c.l.b16 %v2381
        %v2435 = vunpack.c.h.b16 %v2381
        %v2436 = vunpack.c.l.b16 %v2382
        %v2437 = vunpack.c.h.b16 %v2382
        %v2438 = vunpack.c.l.b16 %v2383
        %v2439 = vunpack.c.h.b16 %v2383
        %v2440 = vunpack.c.l.b16 %v2384
        %v2441 = vunpack.c.h.b16 %v2384
        %v2442 = vunpack.c.l.b16 %v2385
        %v2443 = vunpack.c.h.b16 %v2385
        %v2444 = vunpack.c.l.b16 %v2386
        %v2445 = vunpack.c.h.b16 %v2386
        %v2446 = vunpack.c.l.b16 %v2387
        %v2447 = vunpack.c.h.b16 %v2387
        %v2448 = vunpack.c.l.b16 %v2388
        %v2449 = vunpack.c.h.b16 %v2388
        %v2450 = vpack.c.b16 %v2420, %v2418
        %v2451 = vpack.c.b16 %v2421, %v2419
        %v2452 = vpack.c.b16 %v2424, %v2422
        %v2453 = vpack.c.b16 %v2425, %v2423
        %v2454 = vpack.c.b16 %v2428, %v2426
        %v2455 = vpack.c.b16 %v2429, %v2427
        %v2456 = vpack.c.b16 %v2432, %v2430
        %v2457 = vpack.c.b16 %v2433, %v2431
        %v2458 = vpack.c.b16 %v2436, %v2434
        %v2459 = vpack.c.b16 %v2437, %v2435
        %v2460 = vpack.c.b16 %v2440, %v2438
        %v2461 = vpack.c.b16 %v2441, %v2439
        %v2462 = vpack.c.b16 %v2444, %v2442
        %v2463 = vpack.c.b16 %v2445, %v2443
        %v2464 = vpack.c.b16 %v2448, %v2446
        %v2465 = vpack.c.b16 %v2449, %v2447
        %2482 = vmatprep.subr.bf16.mxu0 %v2451
        %2483 = vmatpush1.bf16.msra.mxu0 %v2450
        %2484 = vmatprep.subr.bf16.mxu0 %v2453
        %2485 = vmatpush1.bf16.msra.mxu0 %v2452
        %2486 = vmatprep.subr.bf16.mxu0 %v2455
        %2487 = vmatpush1.bf16.msra.mxu0 %v2454
        %2488 = vmatprep.subr.bf16.mxu0 %v2457
        %2489 = vmatpush1.bf16.msra.mxu0 %v2456
        %2490 = vmatprep.subr.bf16.mxu0 %v2459
        %2491 = vmatpush1.bf16.msra.mxu0 %v2458
        %2492 = vmatprep.subr.bf16.mxu0 %v2461
        %2493 = vmatpush1.bf16.msra.mxu0 %v2460
        %2494 = vmatprep.subr.bf16.mxu0 %v2463
        %2495 = vmatpush1.bf16.msra.mxu0 %v2462
        %2496 = vmatprep.subr.bf16.mxu0 %v2465
        %2497 = vmatpush1.bf16.msra.mxu0 %v2464
        %2498 = vmatprep.subr.bf16.mxu0 0
        %2499 = vmatpush1.bf16.msra.mxu0 0
        %2500 = vmatprep.subr.bf16.mxu0 0
        %2501 = vmatpush1.bf16.msra.mxu0 0
        %2502 = vmatprep.subr.bf16.mxu0 0
        %2503 = vmatpush1.bf16.msra.mxu0 0
        %2504 = vmatprep.subr.bf16.mxu0 0
        %2505 = vmatpush1.bf16.msra.mxu0 0
        %2506 = vmatprep.subr.bf16.mxu0 0
        %2507 = vmatpush1.bf16.msra.mxu0 0
        %2508 = vmatprep.subr.bf16.mxu0 0
        %2509 = vmatpush1.bf16.msra.mxu0 0
        %2510 = vmatprep.subr.bf16.mxu0 0
        %2511 = vmatpush1.bf16.msra.mxu0 0
        %2512 = vmatprep.subr.bf16.mxu0 0
        %2513 = vmatpush1.bf16.msra.mxu0 0
        %2514 = vmatprep.mubr.bf16.mxu0 0
        %2515 = vmatmul.mubr.bf16.gmra.mrb[0].mxu0 %v2371
        %v2516 = vpop.f32.mrb[0].mxu0
        %v2517 = vadd.f32 %v2395, %v2516
        %v2518 = vpop.f32.mrb[0].mxu0
        %v2519 = vadd.f32 %v2399, %v2518
        %v2520 = vpop.f32.mrb[0].mxu0
        %v2521 = vpop.f32.mrb[0].mxu0
        %2522 = vdwg.mxu0
        %s2523 = scalar_lea.vmem %s369, 16 [#allocation11]
        %2524 = vst [vmem:[%s2523] sm:$0xff] %v2517
        %2525 = vst [vmem:[%s2523 + $0x8] sm:$0xff] %v2519
        %s2526 = sand.u32 %s159, 1
        %s2527 = scalar_lea.sflag [#allocation4], %s2526
        %s2528 = sand.u32 %s159, 1
        %s2529 = smul.addr %s2528, 32
        %s2530 = scalar_lea.vmem [#allocation11], %s2529
        // Predicated region
        $region61: #{tpu_custom_call.1} parent=39 // pred_check
          %p2531 = pneg %p169
        $region62: #{tpu_custom_call.1} parent=39 // pred_check_branch
          %2533 = sbr.rel (%p2531) target = $region64
        $region63: #{tpu_custom_call.1} parent=39 // pred_region
          %s2534 = smul.u32 2, %s26
          %s2536 = ssub.s32 512, 512
          %2537 = vsyncadd %s2527, %s2536
          %s2538 = smul.addr %s2534, 2
          %s2539 = smul.addr %s2538, 128
          %s2540 = scalar_lea.hbm %s5, %s2539
          %s2541 = sshll.u32 %s2530, 4
          %s2542 = int_to_ptr.vmem [resolvable:$true] %s2541
          %2547 = dma.vmem_to_hbm [thread:$0]  %s2542, 512, %s2540, %s2527, 256, 256, 16
        $region64: #{tpu_custom_call.1} parent=39 // pred_fallthru
          _
      $region40: #{tpu_custom_call.1} parent=5 // pred_fallthru
        _
      %p2548 = scmp.le.s32.totalorder 2, %s21
      // Predicated region
      $region65: #{tpu_custom_call.1} parent=5 // pred_check
        %p2549 = pneg %p2548
      $region66: #{tpu_custom_call.1} parent=5 // pred_check_branch
        %2551 = sbr.rel (%p2549) target = $region68
      $region67: #{tpu_custom_call.1} parent=5 // pred_region
        %s2552 = ssub.s32 %s21, 2
        // Predicated region
        $region69: #{tpu_custom_call.1} parent=67 // pred_check
          %p2553 = pneg %p175
        $region70: #{tpu_custom_call.1} parent=67 // pred_check_branch
          %2555 = sbr.rel (%p2553) target = $region72
        $region71: #{tpu_custom_call.1} parent=67 // pred_region
          %s2556 = sand.u32 %s160, 1
          %s2557 = scalar_lea.sflag [#allocation4], %s2556
          %s2558 = sand.u32 %s160, 1
          %s2559 = smul.addr %s2558, 32
          %s2560 = scalar_lea.vmem [#allocation11], %s2559
          %2561 = dma.done %s2557, 512
        $region72: #{tpu_custom_call.1} parent=67 // pred_fallthru
          _
      $region68: #{tpu_custom_call.1} parent=5 // pred_fallthru
        _
    $region6: #{tpu_custom_call.1} parent=1 // loop_footer
      %s25 = sadd.s32 1, %s21
    $region7: #{tpu_custom_call.1} parent=1 // loop_footer_branch
      %20 = sbr.rel target = $region3
    $region8: #{tpu_custom_call.1} parent=1 // loop_exit
      _
    %2562 = vsyncpa [#allocation3], 1
    %s2563 = scalar_lea.sflag [#allocation3], 1
    %2564 = vsyncpa %s2563, 1
    %2565 = vsyncpa [#allocation6], 1
    %s2566 = scalar_lea.sflag [#allocation6], 1
    %2567 = vsyncpa %s2566, 1
    %2568 = vsyncpa [#allocation9], 1
    %s2569 = scalar_lea.sflag [#allocation9], 1
    %2570 = vsyncpa %s2569, 1
    %2571 = vsyncpa [#allocation4], 1
    %s2572 = scalar_lea.sflag [#allocation4], 1
    %2573 = vsyncpa %s2572, 1

</llo_original>
